<compile_context>
chip_gen: v6e
topology: v6e:2x2x1
jax: 0.10.0
libtpu: 0.0.40
codegen_flags: <defaults>
</compile_context>

<pallas_src>
from functools import partial

import jax
import jax.numpy as jnp
from jax.experimental import pallas as pl
from jax.experimental.pallas import tpu as pltpu


# ----------------------------------------------------------------------------
# Kernel
# ----------------------------------------------------------------------------
def attention_kernel(x_ref, wq_ref, wkv_ref, wproj_ref, bproj_ref, o_ref,
                     kv_scr, *, num_heads, scale, block_q, kv_chunk,
                     compute_dtype, exp_dtype):
    """One (batch, query-tile) grid step.

    x_ref      : (N, C)           full sequence of the current batch element
    wq_ref     : (C, C)           q projection weight
    wkv_ref    : (C, 2C)          kv projection weight, columns packed [H, 2, hd]
    wproj_ref  : (C, C)           output projection weight
    bproj_ref  : (1, C)           output projection bias
    o_ref      : (block_q, C)     output rows of this query tile
    kv_scr     : (H, N, 2*hd)     packed [K | V] scratch (written at qi == 0)
    """
    qi = pl.program_id(1)
    N, C = x_ref.shape
    H = num_heads
    hd = C // H

    # ---- K / V: computed once per batch element (first query tile), chunked
    #      over rows to bound the f32 temporary of the (chunk, 2C) projection.
    @pl.when(qi == 0)
    def _():
        n_chunks = N // kv_chunk

        @pl.loop(0, n_chunks)
        def _kv_proj(ci):
            n0 = pl.multiple_of(ci * kv_chunk, kv_chunk)
            xc = x_ref[pl.ds(n0, kv_chunk), :]                       # (cn, C)
            kv = jnp.dot(xc, wkv_ref[...],
                         preferred_element_type=jnp.float32)         # (cn, 2C)
            kv = kv.astype(compute_dtype).reshape(kv_chunk, H, 2 * hd)
            # Lane dim (2*hd) is dense for hd >= 64 -> unmasked stores.
            kv_scr[:, pl.ds(n0, kv_chunk), :] = jnp.transpose(kv, (1, 0, 2))

    # ---- Q projection for this query tile (scale folded into q) ------------
    q_start = pl.multiple_of(qi * block_q, block_q)
    x_q = x_ref[pl.ds(q_start, block_q), :]                          # (tq, C)
    q = jnp.dot(x_q, wq_ref[...], preferred_element_type=jnp.float32) * scale
    q = jnp.transpose(q.astype(compute_dtype).reshape(block_q, H, hd),
                      (1, 0, 2))                                     # (H, tq, hd)

    # ---- Scaled dot-product attention, batched over heads ------------------
    k = kv_scr[:, :, :hd]                                            # (H, N, hd)
    v = kv_scr[:, :, hd:]                                            # (H, N, hd)

    s = jnp.einsum('hqd,hkd->hqk', q, k,
                   preferred_element_type=jnp.float32)               # (H, tq, N)
    s = s - jnp.max(s, axis=-1, keepdims=True)                       # f32 stats
    e = jnp.exp(s.astype(exp_dtype))                                 # bf16 on v6e/v7x
    l = jnp.sum(e, axis=-1, keepdims=True, dtype=jnp.float32)        # (H, tq, 1)
    ctx = jnp.einsum('hqk,hkd->hqd', e.astype(compute_dtype), v,
                     preferred_element_type=jnp.float32)             # (H, tq, hd)
    # Normalize after PV: EUP reciprocal + (H, tq, hd) multiplies.
    ctx = ctx * pl.reciprocal(l, approx=True)
    ctx = jnp.transpose(ctx, (1, 0, 2)).reshape(block_q, C).astype(compute_dtype)

    # ---- Output projection (with bias) --------------------------------------
    out = jnp.dot(ctx, wproj_ref[...], preferred_element_type=jnp.float32)
    out = out + bproj_ref[...].astype(jnp.float32)
    o_ref[...] = out.astype(o_ref.dtype)


# ----------------------------------------------------------------------------
# Host-side heuristics
# ----------------------------------------------------------------------------
def _round_up(v, m):
    return -(-v // m) * m


def _vmem_capacity_bytes():
    try:
        return int(pltpu.get_tpu_info().vmem_capacity_bytes)
    except Exception:
        return 64 * 1024 * 1024          # conservative (v7x-sized) fallback


def _exp_dtype(compute_dtype):
    """bf16 exp on bf16 inputs for v6e/v7x; keep f32 on v5 (no bf16 EUP/VPU)."""
    if jnp.dtype(compute_dtype) != jnp.dtype(jnp.bfloat16):
        return jnp.float32
    try:
        kind = jax.devices()[0].device_kind.lower()
    except Exception:
        kind = ""
    if "v5" in kind:
        return jnp.float32
    return jnp.bfloat16


def _pick_kv_chunk(N, target=512):
    """Largest divisor of N that is <= target and a multiple of 8, else N."""
    if N <= target:
        return N
    for cand in range(target, 7, -8):
        if N % cand == 0:
            return cand
    return N


def _pick_block_q(N, C, H, itemsize, vmem_cap):
    """Largest query tile whose estimated working set fits ~half the VMEM."""
    hd = C // H
    lane = lambda d: _round_up(d, 128)
    budget = vmem_cap // 2
    chosen = None
    for cand in (256, 128, 64, 32, 16, 8):
        if N % cand:
            continue
        if chosen is None:
            chosen = cand                                  # largest divisor fallback
        live = (H * cand * lane(N) * (4 + itemsize)        # f32 scores + prob copy
                + H * _round_up(N, 8) * lane(2 * hd) * itemsize   # packed K/V scratch
                + 4 * C * lane(C) * itemsize               # resident weights
                + 2 * _round_up(N, 8) * lane(C) * itemsize # x block (double-buffered)
                + 3 * cand * lane(C) * 4)                  # q / ctx / out f32 temps
        if live <= budget:
            return cand
    return chosen if chosen is not None else N


def _vmem_limit_bytes(N, C, H, block_q, kv_chunk, itemsize, vmem_cap):
    """Padded-layout VMEM estimate, clamped to capacity minus compiler headroom."""
    hd = C // H
    lane = lambda d: _round_up(d, 128)
    sub = lambda d: _round_up(d, 8)
    # Weights counted double-buffered so the limit stays valid on the fallback
    # (non-Buffered(1)) path as well.
    weights = (2 * C * lane(C) + C * lane(2 * C) + 8 * lane(C)) * itemsize * 2
    x_blk = sub(N) * lane(C) * itemsize * 2
    out_blk = sub(block_q) * lane(C) * itemsize * 2
    kv_scr = H * sub(N) * lane(2 * hd) * itemsize
    f32tmp = (sub(kv_chunk) * lane(2 * C)            # kv chunk projection
              + H * sub(block_q) * lane(N)           # scores
              + H * sub(block_q) * lane(hd)          # ctx
              + 2 * sub(block_q) * lane(C)) * 4      # q / out
    cdtmp = (H * sub(block_q) * lane(N)              # probabilities
             + H * sub(kv_chunk) * lane(2 * hd)) * itemsize
    est = weights + x_blk + out_blk + kv_scr + int(1.5 * (f32tmp + cdtmp))
    ceiling = max(vmem_cap - 8 * 1024 * 1024, 32 * 1024 * 1024)
    return int(min(max(est, 32 * 1024 * 1024), ceiling))


# ----------------------------------------------------------------------------
# Wrapper
# ----------------------------------------------------------------------------
def attention_forward(x, wq, wkv, wproj, bproj, *, num_heads, block_q=None):
    """x: (B, N, C); wq: (C, C); wkv: (C, 2C); wproj: (C, C); bproj: (1, C) or (C,)."""
    B, N, C = x.shape
    assert C % num_heads == 0
    H = num_heads
    hd = C // H
    scale = hd ** (-0.5)
    itemsize = x.dtype.itemsize

    # Pre-permute kv weight columns from [2, H, hd] to [H, 2, hd] so each head's
    # K|V lands contiguously in the packed (H, N, 2*hd) scratch (one-time host op).
    wkv_packed = wkv.reshape(C, 2, H, hd).transpose(0, 2, 1, 3).reshape(C, 2 * C)
    bproj2d = jnp.reshape(bproj, (1, C))

    vmem_cap = _vmem_capacity_bytes()
    if block_q is None:
        block_q = _pick_block_q(N, C, H, itemsize, vmem_cap)
    assert N % block_q == 0
    n_q = N // block_q
    kv_chunk = _pick_kv_chunk(N)
    vmem_limit = _vmem_limit_bytes(N, C, H, block_q, kv_chunk, itemsize, vmem_cap)

    kernel = partial(attention_kernel, num_heads=H, scale=scale,
                     block_q=block_q, kv_chunk=kv_chunk,
                     compute_dtype=x.dtype, exp_dtype=_exp_dtype(x.dtype))

    def run(single_buffer):
        def wspec(shape):
            if single_buffer:
                # Constant index map -> block is never re-fetched; one buffer.
                return pl.BlockSpec(shape, lambda b, q: (0, 0),
                                    pipeline_mode=pl.Buffered(1))
            return pl.BlockSpec(shape, lambda b, q: (0, 0))

        call = pl.pallas_call(
            kernel,
            out_shape=jax.ShapeDtypeStruct((B, N, C), x.dtype),
            grid=(B, n_q),
            in_specs=[
                # x: full sequence of one batch element; constant over the
                # query axis -> fetched once per batch element.
                pl.BlockSpec((None, N, C), lambda b, q: (b, 0, 0)),
                wspec((C, C)),          # wq
                wspec((C, 2 * C)),      # wkv (packed columns)
                wspec((C, C)),          # wproj
                wspec((1, C)),          # bproj
            ],
            out_specs=pl.BlockSpec((None, block_q, C), lambda b, q: (b, q, 0)),
            scratch_shapes=[
                pltpu.VMEM((H, N, 2 * hd), x.dtype),   # packed [K | V], head-major
            ],
            compiler_params=pltpu.CompilerParams(
                # Batch axis across TensorCores; query axis stays "arbitrary"
                # because of the K/V scratch carry.
                dimension_semantics=("parallel", "arbitrary"),
                vmem_limit_bytes=vmem_limit),
        )
        return call(x, wq, wkv_packed, wproj, bproj2d)

    try:
        return run(single_buffer=True)
    except Exception:
        # pipeline_mode=pl.Buffered(1) not supported by this jax/Mosaic build;
        # fall back to default double-buffered weight blocks.
        return run(single_buffer=False)


# ----------------------------------------------------------------------------
# Pure-JAX reference (mirrors the PyTorch forward, exact softmax)
# ----------------------------------------------------------------------------
def attention_reference(x, wq, wkv, wproj, bproj, *, num_heads):
    B, N, C = x.shape
    hd = C // num_heads
    scale = hd ** (-0.5)
    q = (x @ wq).reshape(B, N, num_heads, hd).transpose(0, 2, 1, 3)          # (B,H,N,hd)
    kv = (x @ wkv).reshape(B, N, 2, num_heads, hd).transpose(2, 0, 3, 1, 4)
    k, v = kv[0], kv[1]                                                       # (B,H,N,hd)
    attn = jnp.einsum('bhqd,bhkd->bhqk', q, k) * scale
    attn = jax.nn.softmax(attn, axis=-1)
    ctx = jnp.einsum('bhqk,bhkd->bhqd', attn, v)
    ctx = ctx.transpose(0, 2, 1, 3).reshape(B, N, C)
    return ctx @ wproj + bproj.reshape(1, C)


if __name__ == "__main__":
    B, N, C = 2, 8, 32
    num_heads = 2

    key = jax.random.PRNGKey(0)
    kx, kq, kkv, kp, kb = jax.random.split(key, 5)

    bound = 1.0 / (C ** 0.5)
    x = jax.random.normal(kx, (B, N, C), dtype=jnp.float32)
    wq = jax.random.uniform(kq, (C, C), jnp.float32, -bound, bound)
    wkv = jax.random.uniform(kkv, (C, 2 * C), jnp.float32, -bound, bound)
    wproj = jax.random.uniform(kp, (C, C), jnp.float32, -bound, bound)
    bproj = jax.random.uniform(kb, (1, C), jnp.float32, -bound, bound)

    ref = attention_reference(x, wq, wkv, wproj, bproj, num_heads=num_heads)

    # float32 path (approx reciprocal in the softmax normalization -> small tol).
    out = attention_forward(x, wq, wkv, wproj, bproj, num_heads=num_heads)
    out = jax.block_until_ready(out)
    assert out.shape == (B, N, C)
    assert jnp.allclose(out, ref, atol=2e-2, rtol=2e-2), "f32 mismatch vs reference"

    # bfloat16 path (production configuration: bf16 MXU operands, f32 accumulation
    # and softmax statistics; bf16 exp on non-v5 chips).
    xb, wqb, wkvb, wpb, bpb = (a.astype(jnp.bfloat16)
                               for a in (x, wq, wkv, wproj, bproj))
    out_bf16 = attention_forward(xb, wqb, wkvb, wpb, bpb, num_heads=num_heads)
    out_bf16 = jax.block_until_ready(out_bf16)
    assert jnp.allclose(out_bf16.astype(jnp.float32), ref, atol=1e-1, rtol=1e-1), \
        "bf16 mismatch vs reference"

    print("KERNEL_OK")
</pallas_src>

<mosaic_0001>
module attributes {stable_mosaic.version = 11 : i64} {
  func.func @attention_kernel(%arg0: i32, %arg1: i32, %arg2: memref<1x8x32xf32, #tpu.memory_space<vmem>>, %arg3: memref<32x32xf32, #tpu.memory_space<vmem>>, %arg4: memref<32x64xf32, #tpu.memory_space<vmem>>, %arg5: memref<32x32xf32, #tpu.memory_space<vmem>>, %arg6: memref<1x32xf32, #tpu.memory_space<vmem>>, %arg7: memref<1x8x32xf32, #tpu.memory_space<vmem>>, %arg8: memref<2x8x32xf32, #tpu.memory_space<vmem>>) attributes {dimension_semantics = [#tpu.dimension_semantics<parallel>, #tpu.dimension_semantics<arbitrary>], iteration_bounds = array<i64: 2, 1>, scalar_prefetch = 0 : i64, scratch_operands = 1 : i64, tpu.core_type = #tpu.core_type<tc>, window_params = [{transform_indices = @transform_0, window_bounds = array<i64: 1, 8, 32>}, {pipeline_mode = #tpu.pipeline_mode<synchronous>, transform_indices = @transform_1, window_bounds = array<i64: 32, 32>}, {pipeline_mode = #tpu.pipeline_mode<synchronous>, transform_indices = @transform_2, window_bounds = array<i64: 32, 64>}, {pipeline_mode = #tpu.pipeline_mode<synchronous>, transform_indices = @transform_3, window_bounds = array<i64: 32, 32>}, {pipeline_mode = #tpu.pipeline_mode<synchronous>, transform_indices = @transform_4, window_bounds = array<i64: 1, 32>}, {transform_indices = @transform_5, window_bounds = array<i64: 1, 8, 32>}]} {
    %c0_i32 = arith.constant 0 : i32
    %0 = arith.cmpi eq, %arg1, %c0_i32 : i32
    %1 = arith.extui %0 : i1 to i32
    %c0_i32_0 = arith.constant 0 : i32
    %2 = arith.cmpi ne, %1, %c0_i32_0 : i32
    scf.if %2 {
      %c0_i32_22 = arith.constant 0 : i32
      %c1_i32 = arith.constant 1 : i32
      %38 = arith.muli %c0_i32_22, %c1_i32 : i32
      %c0_i32_23 = arith.constant 0 : i32
      %39 = arith.addi %c0_i32_23, %38 : i32
      %c8_i32_24 = arith.constant 8 : i32
      %40 = arith.muli %39, %c8_i32_24 : i32
      %41 = tpu.assume_multiple %40, 8 : i32
      %c0_25 = arith.constant 0 : index
      %42 = arith.index_cast %41 : i32 to index
      %c0_26 = arith.constant 0 : index
      %43 = vector.load %arg2[%c0_25, %42, %c0_26] : memref<1x8x32xf32, #tpu.memory_space<vmem>>, vector<1x8x32xf32>
      %44 = vector.shape_cast %43 : vector<1x8x32xf32> to vector<8x32xf32>
      %c0_27 = arith.constant 0 : index
      %c0_28 = arith.constant 0 : index
      %45 = vector.load %arg4[%c0_27, %c0_28] : memref<32x64xf32, #tpu.memory_space<vmem>>, vector<32x64xf32>
      %cst_29 = arith.constant dense<0.000000e+00> : vector<8x64xf32>
      %46 = tpu.matmul %44, %45, %cst_29 {dimension_numbers = #tpu.dot_dimension_numbers<[1], [0], [0], [1], [0, 0, 1, 1], [], []>} : vector<8x32xf32>, vector<32x64xf32>, vector<8x64xf32> -> vector<8x64xf32>
      %47 = vector.shape_cast %46 : vector<8x64xf32> to vector<8x2x32xf32>
      %48 = tpu.transpose %47, [1, 0, 2] : vector<8x2x32xf32> -> vector<2x8x32xf32>
      %c0_30 = arith.constant 0 : index
      %49 = arith.index_cast %41 : i32 to index
      %c0_31 = arith.constant 0 : index
      %50 = vector.load %arg8[%c0_30, %49, %c0_31] : memref<2x8x32xf32, #tpu.memory_space<vmem>>, vector<2x8x32xf32>
      tpu.vector_store %arg8[%c0_30, %49, %c0_31], %48 {strides = array<i32>} : memref<2x8x32xf32, #tpu.memory_space<vmem>>, vector<2x8x32xf32>,
      %c1_i32_32 = arith.constant 1 : i32
    } else {
    }
    %c8_i32 = arith.constant 8 : i32
    %3 = arith.muli %arg1, %c8_i32 : i32
    %4 = tpu.assume_multiple %3, 8 : i32
    %c0 = arith.constant 0 : index
    %5 = arith.index_cast %4 : i32 to index
    %c0_1 = arith.constant 0 : index
    %6 = vector.load %arg2[%c0, %5, %c0_1] : memref<1x8x32xf32, #tpu.memory_space<vmem>>, vector<1x8x32xf32>
    %7 = vector.shape_cast %6 : vector<1x8x32xf32> to vector<8x32xf32>
    %c0_2 = arith.constant 0 : index
    %c0_3 = arith.constant 0 : index
    %8 = vector.load %arg3[%c0_2, %c0_3] : memref<32x32xf32, #tpu.memory_space<vmem>>, vector<32x32xf32>
    %cst = arith.constant dense<0.000000e+00> : vector<8x32xf32>
    %9 = tpu.matmul %7, %8, %cst {dimension_numbers = #tpu.dot_dimension_numbers<[1], [0], [0], [1], [0, 0, 1, 1], [], []>} : vector<8x32xf32>, vector<32x32xf32>, vector<8x32xf32> -> vector<8x32xf32>
    %cst_4 = arith.constant 2.500000e-01 : f32
    %10 = vector.broadcast %cst_4 : f32 to vector<8x32xf32>
    %11 = arith.mulf %9, %10 : vector<8x32xf32>
    %12 = vector.shape_cast %11 : vector<8x32xf32> to vector<8x2x16xf32>
    %13 = tpu.transpose %12, [1, 0, 2] : vector<8x2x16xf32> -> vector<2x8x16xf32>
    %c0_5 = arith.constant 0 : index
    %c0_6 = arith.constant 0 : index
    %c0_7 = arith.constant 0 : index
    %14 = vector.load %arg8[%c0_5, %c0_6, %c0_7] : memref<2x8x32xf32, #tpu.memory_space<vmem>>, vector<2x8x16xf32>
    %c0_8 = arith.constant 0 : index
    %c0_9 = arith.constant 0 : index
    %c16 = arith.constant 16 : index
    %15 = vector.load %arg8[%c0_8, %c0_9, %c16] : memref<2x8x32xf32, #tpu.memory_space<vmem>>, vector<2x8x16xf32>
    "tpu.trace_start"() <{level = 10 : i32, message = "hqd,hkd->hqk"}> : () -> ()
    %cst_10 = arith.constant dense<0.000000e+00> : vector<2x8x8xf32>
    %16 = tpu.matmul %13, %14, %cst_10 {dimension_numbers = #tpu.dot_dimension_numbers<[2], [2], [1], [1], [0, 0, 0, 1, 1, 1], [0], [0]>} : vector<2x8x16xf32>, vector<2x8x16xf32>, vector<2x8x8xf32> -> vector<2x8x8xf32>
    "tpu.trace_stop"() : () -> ()
    %cst_11 = arith.constant dense<0xFF800000> : vector<2x8xf32>
    %17 = vector.multi_reduction <maximumf>, %16, %cst_11 [2] : vector<2x8x8xf32> to vector<2x8xf32>
    %18 = vector.shape_cast %17 : vector<2x8xf32> to vector<2x8x1xf32>
    %19 = vector.broadcast %18 : vector<2x8x1xf32> to vector<2x8x8xf32>
    %20 = arith.subf %16, %19 : vector<2x8x8xf32>
    %21 = math.exp %20 : vector<2x8x8xf32>
    %cst_12 = arith.constant dense<0.000000e+00> : vector<2x8xf32>
    %22 = vector.multi_reduction <add>, %21, %cst_12 [2] : vector<2x8x8xf32> to vector<2x8xf32>
    %23 = vector.shape_cast %22 : vector<2x8xf32> to vector<2x8x1xf32>
    "tpu.trace_start"() <{level = 10 : i32, message = "hqk,hkd->hqd"}> : () -> ()
    %cst_13 = arith.constant dense<0.000000e+00> : vector<2x8x16xf32>
    %24 = tpu.matmul %21, %15, %cst_13 {dimension_numbers = #tpu.dot_dimension_numbers<[2], [1], [1], [2], [0, 0, 0, 1, 1, 2], [0], [0]>} : vector<2x8x8xf32>, vector<2x8x16xf32>, vector<2x8x16xf32> -> vector<2x8x16xf32>
    "tpu.trace_stop"() : () -> ()
    %25 = tpu.reciprocal %23 {approx = true} : vector<2x8x1xf32> -> vector<2x8x1xf32>
    %26 = vector.broadcast %25 : vector<2x8x1xf32> to vector<2x8x16xf32>
    %27 = arith.mulf %24, %26 : vector<2x8x16xf32>
    %28 = tpu.transpose %27, [1, 0, 2] : vector<2x8x16xf32> -> vector<8x2x16xf32>
    %29 = vector.shape_cast %28 : vector<8x2x16xf32> to vector<8x32xf32>
    %c0_14 = arith.constant 0 : index
    %c0_15 = arith.constant 0 : index
    %30 = vector.load %arg5[%c0_14, %c0_15] : memref<32x32xf32, #tpu.memory_space<vmem>>, vector<32x32xf32>
    %cst_16 = arith.constant dense<0.000000e+00> : vector<8x32xf32>
    %31 = tpu.matmul %29, %30, %cst_16 {dimension_numbers = #tpu.dot_dimension_numbers<[1], [0], [0], [1], [0, 0, 1, 1], [], []>} : vector<8x32xf32>, vector<32x32xf32>, vector<8x32xf32> -> vector<8x32xf32>
    %c0_17 = arith.constant 0 : index
    %c0_18 = arith.constant 0 : index
    %32 = vector.load %arg6[%c0_17, %c0_18] : memref<1x32xf32, #tpu.memory_space<vmem>>, vector<1x32xf32>
    %33 = vector.broadcast %32 : vector<1x32xf32> to vector<8x32xf32>
    %34 = arith.addf %31, %33 : vector<8x32xf32>
    %c0_19 = arith.constant 0 : index
    %c0_20 = arith.constant 0 : index
    %c0_21 = arith.constant 0 : index
    %35 = vector.load %arg7[%c0_19, %c0_20, %c0_21] : memref<1x8x32xf32, #tpu.memory_space<vmem>>, vector<1x8x32xf32>
    %36 = vector.shape_cast %35 : vector<1x8x32xf32> to vector<8x32xf32>
    %37 = vector.shape_cast %34 : vector<8x32xf32> to vector<1x8x32xf32>
    tpu.vector_store %arg7[%c0_19, %c0_20, %c0_21], %37 {strides = array<i32>} : memref<1x8x32xf32, #tpu.memory_space<vmem>>, vector<1x8x32xf32>,
    return
  }
  func.func @transform_0(%arg0: i32, %arg1: i32) -> (i32, i32, i32) {
    %c0_i32 = arith.constant 0 : i32
    %c0_i32_0 = arith.constant 0 : i32
    %c0_i32_1 = arith.constant 0 : i32
    return %arg0, %c0_i32, %c0_i32_0 : i32, i32, i32
  }
  func.func @transform_1(%arg0: i32, %arg1: i32) -> (i32, i32) {
    %c0_i32 = arith.constant 0 : i32
    %c0_i32_0 = arith.constant 0 : i32
    %c0_i32_1 = arith.constant 0 : i32
    return %c0_i32, %c0_i32_0 : i32, i32
  }
  func.func @transform_2(%arg0: i32, %arg1: i32) -> (i32, i32) {
    %c0_i32 = arith.constant 0 : i32
    %c0_i32_0 = arith.constant 0 : i32
    %c0_i32_1 = arith.constant 0 : i32
    return %c0_i32, %c0_i32_0 : i32, i32
  }
  func.func @transform_3(%arg0: i32, %arg1: i32) -> (i32, i32) {
    %c0_i32 = arith.constant 0 : i32
    %c0_i32_0 = arith.constant 0 : i32
    %c0_i32_1 = arith.constant 0 : i32
    return %c0_i32, %c0_i32_0 : i32, i32
  }
  func.func @transform_4(%arg0: i32, %arg1: i32) -> (i32, i32) {
    %c0_i32 = arith.constant 0 : i32
    %c0_i32_0 = arith.constant 0 : i32
    %c0_i32_1 = arith.constant 0 : i32
    return %c0_i32, %c0_i32_0 : i32, i32
  }
  func.func @transform_5(%arg0: i32, %arg1: i32) -> (i32, i32, i32) {
    %c0_i32 = arith.constant 0 : i32
    %c0_i32_0 = arith.constant 0 : i32
    return %arg0, %arg1, %c0_i32 : i32, i32, i32
  }
}

module attributes {stable_mosaic.version = 11 : i64} {
  func.func @attention_kernel(%arg0: i32, %arg1: i32, %arg2: memref<1x8x32xf32, #tpu.memory_space<vmem>>, %arg3: memref<32x32xf32, #tpu.memory_space<vmem>>, %arg4: memref<32x64xf32, #tpu.memory_space<vmem>>, %arg5: memref<32x32xf32, #tpu.memory_space<vmem>>, %arg6: memref<1x32xf32, #tpu.memory_space<vmem>>, %arg7: memref<1x8x32xf32, #tpu.memory_space<vmem>>, %arg8: memref<2x8x32xf32, #tpu.memory_space<vmem>>) attributes {dimension_semantics = [#tpu.dimension_semantics<parallel>, #tpu.dimension_semantics<arbitrary>], iteration_bounds = array<i64: 2, 1>, scalar_prefetch = 0 : i64, scratch_operands = 1 : i64, tpu.core_type = #tpu.core_type<tc>, window_params = [{transform_indices = @transform_0, window_bounds = array<i64: 1, 8, 32>}, {pipeline_mode = #tpu.pipeline_mode<synchronous>, transform_indices = @transform_1, window_bounds = array<i64: 32, 32>}, {pipeline_mode = #tpu.pipeline_mode<synchronous>, transform_indices = @transform_2, window_bounds = array<i64: 32, 64>}, {pipeline_mode = #tpu.pipeline_mode<synchronous>, transform_indices = @transform_3, window_bounds = array<i64: 32, 32>}, {pipeline_mode = #tpu.pipeline_mode<synchronous>, transform_indices = @transform_4, window_bounds = array<i64: 1, 32>}, {transform_indices = @transform_5, window_bounds = array<i64: 1, 8, 32>}]} {
    %c0_i32 = arith.constant 0 : i32
    %0 = arith.cmpi eq, %arg1, %c0_i32 : i32
    %1 = arith.extui %0 : i1 to i32
    %c0_i32_0 = arith.constant 0 : i32
    %2 = arith.cmpi ne, %1, %c0_i32_0 : i32
    scf.if %2 {
      %c0_i32_22 = arith.constant 0 : i32
      %c1_i32 = arith.constant 1 : i32
      %38 = arith.muli %c0_i32_22, %c1_i32 : i32
      %c0_i32_23 = arith.constant 0 : i32
      %39 = arith.addi %c0_i32_23, %38 : i32
      %c8_i32_24 = arith.constant 8 : i32
      %40 = arith.muli %39, %c8_i32_24 : i32
      %41 = tpu.assume_multiple %40, 8 : i32
      %c0_25 = arith.constant 0 : index
      %42 = arith.index_cast %41 : i32 to index
      %c0_26 = arith.constant 0 : index
      %43 = vector.load %arg2[%c0_25, %42, %c0_26] : memref<1x8x32xf32, #tpu.memory_space<vmem>>, vector<1x8x32xf32>
      %44 = vector.shape_cast %43 : vector<1x8x32xf32> to vector<8x32xf32>
      %c0_27 = arith.constant 0 : index
      %c0_28 = arith.constant 0 : index
      %45 = vector.load %arg4[%c0_27, %c0_28] : memref<32x64xf32, #tpu.memory_space<vmem>>, vector<32x64xf32>
      %cst_29 = arith.constant dense<0.000000e+00> : vector<8x64xf32>
      %46 = tpu.matmul %44, %45, %cst_29 {dimension_numbers = #tpu.dot_dimension_numbers<[1], [0], [0], [1], [0, 0, 1, 1], [], []>} : vector<8x32xf32>, vector<32x64xf32>, vector<8x64xf32> -> vector<8x64xf32>
      %47 = vector.shape_cast %46 : vector<8x64xf32> to vector<8x2x32xf32>
      %48 = tpu.transpose %47, [1, 0, 2] : vector<8x2x32xf32> -> vector<2x8x32xf32>
      %c0_30 = arith.constant 0 : index
      %49 = arith.index_cast %41 : i32 to index
      %c0_31 = arith.constant 0 : index
      %50 = vector.load %arg8[%c0_30, %49, %c0_31] : memref<2x8x32xf32, #tpu.memory_space<vmem>>, vector<2x8x32xf32>
      tpu.vector_store %arg8[%c0_30, %49, %c0_31], %48 {strides = array<i32>} : memref<2x8x32xf32, #tpu.memory_space<vmem>>, vector<2x8x32xf32>,
      %c1_i32_32 = arith.constant 1 : i32
    } else {
    }
    %c8_i32 = arith.constant 8 : i32
    %3 = arith.muli %arg1, %c8_i32 : i32
    %4 = tpu.assume_multiple %3, 8 : i32
    %c0 = arith.constant 0 : index
    %5 = arith.index_cast %4 : i32 to index
    %c0_1 = arith.constant 0 : index
    %6 = vector.load %arg2[%c0, %5, %c0_1] : memref<1x8x32xf32, #tpu.memory_space<vmem>>, vector<1x8x32xf32>
    %7 = vector.shape_cast %6 : vector<1x8x32xf32> to vector<8x32xf32>
    %c0_2 = arith.constant 0 : index
    %c0_3 = arith.constant 0 : index
    %8 = vector.load %arg3[%c0_2, %c0_3] : memref<32x32xf32, #tpu.memory_space<vmem>>, vector<32x32xf32>
    %cst = arith.constant dense<0.000000e+00> : vector<8x32xf32>
    %9 = tpu.matmul %7, %8, %cst {dimension_numbers = #tpu.dot_dimension_numbers<[1], [0], [0], [1], [0, 0, 1, 1], [], []>} : vector<8x32xf32>, vector<32x32xf32>, vector<8x32xf32> -> vector<8x32xf32>
    %cst_4 = arith.constant 2.500000e-01 : f32
    %10 = vector.broadcast %cst_4 : f32 to vector<8x32xf32>
    %11 = arith.mulf %9, %10 : vector<8x32xf32>
    %12 = vector.shape_cast %11 : vector<8x32xf32> to vector<8x2x16xf32>
    %13 = tpu.transpose %12, [1, 0, 2] : vector<8x2x16xf32> -> vector<2x8x16xf32>
    %c0_5 = arith.constant 0 : index
    %c0_6 = arith.constant 0 : index
    %c0_7 = arith.constant 0 : index
    %14 = vector.load %arg8[%c0_5, %c0_6, %c0_7] : memref<2x8x32xf32, #tpu.memory_space<vmem>>, vector<2x8x16xf32>
    %c0_8 = arith.constant 0 : index
    %c0_9 = arith.constant 0 : index
    %c16 = arith.constant 16 : index
    %15 = vector.load %arg8[%c0_8, %c0_9, %c16] : memref<2x8x32xf32, #tpu.memory_space<vmem>>, vector<2x8x16xf32>
    "tpu.trace_start"() <{level = 10 : i32, message = "hqd,hkd->hqk"}> : () -> ()
    %cst_10 = arith.constant dense<0.000000e+00> : vector<2x8x8xf32>
    %16 = tpu.matmul %13, %14, %cst_10 {dimension_numbers = #tpu.dot_dimension_numbers<[2], [2], [1], [1], [0, 0, 0, 1, 1, 1], [0], [0]>} : vector<2x8x16xf32>, vector<2x8x16xf32>, vector<2x8x8xf32> -> vector<2x8x8xf32>
    "tpu.trace_stop"() : () -> ()
    %cst_11 = arith.constant dense<0xFF800000> : vector<2x8xf32>
    %17 = vector.multi_reduction <maximumf>, %16, %cst_11 [2] : vector<2x8x8xf32> to vector<2x8xf32>
    %18 = vector.shape_cast %17 : vector<2x8xf32> to vector<2x8x1xf32>
    %19 = vector.broadcast %18 : vector<2x8x1xf32> to vector<2x8x8xf32>
    %20 = arith.subf %16, %19 : vector<2x8x8xf32>
    %21 = math.exp %20 : vector<2x8x8xf32>
    %cst_12 = arith.constant dense<0.000000e+00> : vector<2x8xf32>
    %22 = vector.multi_reduction <add>, %21, %cst_12 [2] : vector<2x8x8xf32> to vector<2x8xf32>
    %23 = vector.shape_cast %22 : vector<2x8xf32> to vector<2x8x1xf32>
    "tpu.trace_start"() <{level = 10 : i32, message = "hqk,hkd->hqd"}> : () -> ()
    %cst_13 = arith.constant dense<0.000000e+00> : vector<2x8x16xf32>
    %24 = tpu.matmul %21, %15, %cst_13 {dimension_numbers = #tpu.dot_dimension_numbers<[2], [1], [1], [2], [0, 0, 0, 1, 1, 2], [0], [0]>} : vector<2x8x8xf32>, vector<2x8x16xf32>, vector<2x8x16xf32> -> vector<2x8x16xf32>
    "tpu.trace_stop"() : () -> ()
    %25 = tpu.reciprocal %23 {approx = true} : vector<2x8x1xf32> -> vector<2x8x1xf32>
    %26 = vector.broadcast %25 : vector<2x8x1xf32> to vector<2x8x16xf32>
    %27 = arith.mulf %24, %26 : vector<2x8x16xf32>
    %28 = tpu.transpose %27, [1, 0, 2] : vector<2x8x16xf32> -> vector<8x2x16xf32>
    %29 = vector.shape_cast %28 : vector<8x2x16xf32> to vector<8x32xf32>
    %c0_14 = arith.constant 0 : index
    %c0_15 = arith.constant 0 : index
    %30 = vector.load %arg5[%c0_14, %c0_15] : memref<32x32xf32, #tpu.memory_space<vmem>>, vector<32x32xf32>
    %cst_16 = arith.constant dense<0.000000e+00> : vector<8x32xf32>
    %31 = tpu.matmul %29, %30, %cst_16 {dimension_numbers = #tpu.dot_dimension_numbers<[1], [0], [0], [1], [0, 0, 1, 1], [], []>} : vector<8x32xf32>, vector<32x32xf32>, vector<8x32xf32> -> vector<8x32xf32>
    %c0_17 = arith.constant 0 : index
    %c0_18 = arith.constant 0 : index
    %32 = vector.load %arg6[%c0_17, %c0_18] : memref<1x32xf32, #tpu.memory_space<vmem>>, vector<1x32xf32>
    %33 = vector.broadcast %32 : vector<1x32xf32> to vector<8x32xf32>
    %34 = arith.addf %31, %33 : vector<8x32xf32>
    %c0_19 = arith.constant 0 : index
    %c0_20 = arith.constant 0 : index
    %c0_21 = arith.constant 0 : index
    %35 = vector.load %arg7[%c0_19, %c0_20, %c0_21] : memref<1x8x32xf32, #tpu.memory_space<vmem>>, vector<1x8x32xf32>
    %36 = vector.shape_cast %35 : vector<1x8x32xf32> to vector<8x32xf32>
    %37 = vector.shape_cast %34 : vector<8x32xf32> to vector<1x8x32xf32>
    tpu.vector_store %arg7[%c0_19, %c0_20, %c0_21], %37 {strides = array<i32>} : memref<1x8x32xf32, #tpu.memory_space<vmem>>, vector<1x8x32xf32>,
    return
  }
  func.func @transform_0(%arg0: i32, %arg1: i32) -> (i32, i32, i32) {
    %c0_i32 = arith.constant 0 : i32
    %c0_i32_0 = arith.constant 0 : i32
    %c0_i32_1 = arith.constant 0 : i32
    return %arg0, %c0_i32, %c0_i32_0 : i32, i32, i32
  }
  func.func @transform_1(%arg0: i32, %arg1: i32) -> (i32, i32) {
    %c0_i32 = arith.constant 0 : i32
    %c0_i32_0 = arith.constant 0 : i32
    %c0_i32_1 = arith.constant 0 : i32
    return %c0_i32, %c0_i32_0 : i32, i32
  }
  func.func @transform_2(%arg0: i32, %arg1: i32) -> (i32, i32) {
    %c0_i32 = arith.constant 0 : i32
    %c0_i32_0 = arith.constant 0 : i32
    %c0_i32_1 = arith.constant 0 : i32
    return %c0_i32, %c0_i32_0 : i32, i32
  }
  func.func @transform_3(%arg0: i32, %arg1: i32) -> (i32, i32) {
    %c0_i32 = arith.constant 0 : i32
    %c0_i32_0 = arith.constant 0 : i32
    %c0_i32_1 = arith.constant 0 : i32
    return %c0_i32, %c0_i32_0 : i32, i32
  }
  func.func @transform_4(%arg0: i32, %arg1: i32) -> (i32, i32) {
    %c0_i32 = arith.constant 0 : i32
    %c0_i32_0 = arith.constant 0 : i32
    %c0_i32_1 = arith.constant 0 : i32
    return %c0_i32, %c0_i32_0 : i32, i32
  }
  func.func @transform_5(%arg0: i32, %arg1: i32) -> (i32, i32, i32) {
    %c0_i32 = arith.constant 0 : i32
    %c0_i32_0 = arith.constant 0 : i32
    return %arg0, %arg1, %c0_i32 : i32, i32, i32
  }
}

</mosaic_0001>

<llo_original>
// kernel: tpu_custom_call.1
$region0: #{tpu_custom_call.1}
  #allocation0 [shape = 'u32[]', space=smem, size = 0x4, offset = 0x4, fixed_abs, tag = 'smem constant byte address 0x4 - core index']
  #allocation1 [shape = 'u32[144,128]{1,0:T(1,128)}', space=vmem, size = 0x12000, scoped, tag = 'internal scratch']
  #allocation2 [shape = 'f32[2,8,32]{2,1,0:T(8,128)}', space=vmem, size = 0x2000, scoped, tag = 'scratch operand']
  %s0 = inlined_call_operand.hbm [shape: f32[2,8,32], index: 0, kind: input, shape index: {}]
  %s1 = inlined_call_operand.hbm [shape: f32[32,32], index: 1, kind: input, shape index: {}]
  %s2 = inlined_call_operand.hbm [shape: f32[32,64], index: 2, kind: input, shape index: {}]
  %s3 = inlined_call_operand.hbm [shape: f32[32,32], index: 3, kind: input, shape index: {}]
  %s4 = inlined_call_operand.vmem [shape: f32[1,32], index: 4, kind: input, shape index: {}]
  %s5 = inlined_call_operand.hbm [shape: f32[2,8,32], index: 5, kind: output, shape index: {}]
  %s6 = sld [smem:[#allocation0]]
  $region73: #{tpu_custom_call.1} parent=0
    _
  %s8 = ssub.s32 1, %s6
  %s9 = scalar_select 0, %s8, %s6
  $region1: #{tpu_custom_call.1} parent=0
    #allocation3 [shape = 'u8[8192]{0}', space=vmem, size = 0x2000, scoped, tag = 'input window, operand 0']
    #allocation4 [shape = 's32[2]{0}', space=sflag, size = 0x8, scoped, tag = 'scoped memory for tpu_custom_call.1']
    #allocation5 [shape = 's32[2]{0}', space=sflag, size = 0x8, scoped, tag = 'scoped memory for tpu_custom_call.1']
    #allocation6 [shape = 'u8[16384]{0}', space=vmem, size = 0x4000, scoped, tag = 'input window, operand 1, single buffered']
    #allocation7 [shape = 's32[1]{0}', space=sflag, size = 0x4, scoped, tag = 'scoped memory for tpu_custom_call.1']
    #allocation8 [shape = 'u8[16384]{0}', space=vmem, size = 0x4000, scoped, tag = 'input window, operand 2, single buffered']
    #allocation9 [shape = 'u8[16384]{0}', space=vmem, size = 0x4000, scoped, tag = 'input window, operand 3, single buffered']
    #allocation10 [shape = 's32[1]{0}', space=sflag, size = 0x4, scoped, tag = 'scoped memory for tpu_custom_call.1']
    #allocation11 [shape = 'u8[8192]{0}', space=vmem, size = 0x2000, scoped, tag = 'output window, operand 0']
    %10 = vsyncpa [#allocation4], 0
    %s11 = scalar_lea.sflag [#allocation4], 1
    %12 = vsyncpa %s11, 0
    %13 = vsyncpa [#allocation7], 0
    %14 = vsyncpa [#allocation10], 0
    %15 = vsyncpa [#allocation5], 0
    %s16 = scalar_lea.sflag [#allocation5], 1
    %17 = vsyncpa %s16, 0
    loop: start=0, step=1, limit=4
    $region2: #{tpu_custom_call.1} parent=1 // loop_pre_header
      _
    $region3: #{tpu_custom_call.1} parent=1 // loop_header
      %s19 = sphi 0, %s23
      %p20 = scmp.ge.s32.totalorder %s19, 4
      %s26 = sphi 0, %s38
      %s27 = sphi 0, %s34
      %s28 = sphi 0, %s26
      %s29 = sphi 0, %s27
      %s30 = sphi 0, %s28
      %s31 = sphi 0, %s29
      %s41 = sphi 0, %s43
      %s44 = sphi 0, %s41
      %s45 = sphi 0, %s44
      %s61 = sphi 0, %s45
      %s65 = sphi 0, %s65
      %s67 = sphi 0, %s65
      %s68 = sphi 0, %s67
      %s82 = sphi 0, %s68
      %s86 = sphi 0, %s86
      %s88 = sphi 0, %s86
      %s89 = sphi 0, %s88
      %s103 = sphi 0, %s89
      %s107 = sphi 0, %s107
      %s109 = sphi 0, %s107
      %s110 = sphi 0, %s109
      %s124 = sphi 0, %s110
      %s128 = sphi 0, %s128
      %s130 = sphi 0, %s128
      %s131 = sphi 0, %s130
      %s145 = sphi 0, %s131
      %s153 = sphi 0, %s155
      %s156 = sphi 0, %s153
      %s157 = sphi 0, %s156
      %s173 = sphi 0, %s157
    $region4: #{tpu_custom_call.1} parent=1 // loop_header_branch
      %22 = sbr.rel (%p20) target = $region8
    $region5: #{tpu_custom_call.1} parent=1 // loop_body
      %s24 = ssub.s32 %s19, 1
      %s25 = ssub.s32 %s19, 2
      %s32 = sadd.s32 1, %s27
      %p33 = scmp.ge.s32.totalorder %s32, 1
      %s34 = scalar_select %p33, 0, %s32
      %s35 = sadd.s32 1, %s26
      %s36 = scalar_select %p33, %s35, %s26
      %p37 = scmp.ge.s32.totalorder %s36, 2
      %s38 = scalar_select %p37, 0, %s36
      %s39 = ssub.s32 %s26, %s38
      %p40 = scmp.eq.s32.totalorder %s39, 0
      %s42 = sadd.s32 %s41, 1
      %s43 = scalar_select %p40, %s41, %s42
      %p46 = pneg %p40
      %p47 = scmp.eq.s32.totalorder %s19, 1
      %p48 = por %p46, %p47
      %p49 = scmp.ne.s32.totalorder %s41, %s44
      %p50 = scmp.eq.s32.totalorder %s19, 0
      %p51 = por %p49, %p50
      %p52 = scmp.ne.s32.totalorder %s41, %s44
      %p53 = scmp.eq.s32.totalorder %s24, 1
      %p54 = por %p52, %p53
      %p55 = scmp.ne.s32.totalorder %s44, %s45
      %p56 = scmp.eq.s32.totalorder %s24, 0
      %p57 = por %p55, %p56
      %p58 = scmp.ne.s32.totalorder %s44, %s45
      %p59 = scmp.eq.s32.totalorder %s25, 1
      %p60 = por %p58, %p59
      %p62 = scmp.ne.s32.totalorder %s45, %s61
      %p63 = scmp.eq.s32.totalorder %s25, 0
      %p64 = por %p62, %p63
      %s66 = sadd.s32 %s65, 1
      %p69 = scmp.eq.s32.totalorder %s19, 1
      %p70 = scmp.ne.s32.totalorder %s65, %s67
      %p71 = scmp.eq.s32.totalorder %s19, 0
      %p72 = por %p70, %p71
      %p73 = scmp.ne.s32.totalorder %s65, %s67
      %p74 = scmp.eq.s32.totalorder %s24, 1
      %p75 = por %p73, %p74
      %p76 = scmp.ne.s32.totalorder %s67, %s68
      %p77 = scmp.eq.s32.totalorder %s24, 0
      %p78 = por %p76, %p77
      %p79 = scmp.ne.s32.totalorder %s67, %s68
      %p80 = scmp.eq.s32.totalorder %s25, 1
      %p81 = por %p79, %p80
      %p83 = scmp.ne.s32.totalorder %s68, %s82
      %p84 = scmp.eq.s32.totalorder %s25, 0
      %p85 = por %p83, %p84
      %s87 = sadd.s32 %s86, 1
      %p90 = scmp.eq.s32.totalorder %s19, 1
      %p91 = scmp.ne.s32.totalorder %s86, %s88
      %p92 = scmp.eq.s32.totalorder %s19, 0
      %p93 = por %p91, %p92
      %p94 = scmp.ne.s32.totalorder %s86, %s88
      %p95 = scmp.eq.s32.totalorder %s24, 1
      %p96 = por %p94, %p95
      %p97 = scmp.ne.s32.totalorder %s88, %s89
      %p98 = scmp.eq.s32.totalorder %s24, 0
      %p99 = por %p97, %p98
      %p100 = scmp.ne.s32.totalorder %s88, %s89
      %p101 = scmp.eq.s32.totalorder %s25, 1
      %p102 = por %p100, %p101
      %p104 = scmp.ne.s32.totalorder %s89, %s103
      %p105 = scmp.eq.s32.totalorder %s25, 0
      %p106 = por %p104, %p105
      %s108 = sadd.s32 %s107, 1
      %p111 = scmp.eq.s32.totalorder %s19, 1
      %p112 = scmp.ne.s32.totalorder %s107, %s109
      %p113 = scmp.eq.s32.totalorder %s19, 0
      %p114 = por %p112, %p113
      %p115 = scmp.ne.s32.totalorder %s107, %s109
      %p116 = scmp.eq.s32.totalorder %s24, 1
      %p117 = por %p115, %p116
      %p118 = scmp.ne.s32.totalorder %s109, %s110
      %p119 = scmp.eq.s32.totalorder %s24, 0
      %p120 = por %p118, %p119
      %p121 = scmp.ne.s32.totalorder %s109, %s110
      %p122 = scmp.eq.s32.totalorder %s25, 1
      %p123 = por %p121, %p122
      %p125 = scmp.ne.s32.totalorder %s110, %s124
      %p126 = scmp.eq.s32.totalorder %s25, 0
      %p127 = por %p125, %p126
      %s129 = sadd.s32 %s128, 1
      %p132 = scmp.eq.s32.totalorder %s19, 1
      %p133 = scmp.ne.s32.totalorder %s128, %s130
      %p134 = scmp.eq.s32.totalorder %s19, 0
      %p135 = por %p133, %p134
      %p136 = scmp.ne.s32.totalorder %s128, %s130
      %p137 = scmp.eq.s32.totalorder %s24, 1
      %p138 = por %p136, %p137
      %p139 = scmp.ne.s32.totalorder %s130, %s131
      %p140 = scmp.eq.s32.totalorder %s24, 0
      %p141 = por %p139, %p140
      %p142 = scmp.ne.s32.totalorder %s130, %s131
      %p143 = scmp.eq.s32.totalorder %s25, 1
      %p144 = por %p142, %p143
      %p146 = scmp.ne.s32.totalorder %s131, %s145
      %p147 = scmp.eq.s32.totalorder %s25, 0
      %p148 = por %p146, %p147
      %s149 = ssub.s32 %s26, %s38
      %s150 = ssub.s32 %s27, %s34
      %s151 = sor.u32 %s149, %s150
      %p152 = scmp.eq.s32.totalorder %s151, 0
      %s154 = sadd.s32 %s153, 1
      %s155 = scalar_select %p152, %s153, %s154
      %p158 = pneg %p152
      %p159 = scmp.eq.s32.totalorder %s19, 1
      %p160 = por %p158, %p159
      %p161 = scmp.ne.s32.totalorder %s153, %s156
      %p162 = scmp.eq.s32.totalorder %s19, 0
      %p163 = por %p161, %p162
      %p164 = scmp.ne.s32.totalorder %s153, %s156
      %p165 = scmp.eq.s32.totalorder %s24, 1
      %p166 = por %p164, %p165
      %p167 = scmp.ne.s32.totalorder %s156, %s157
      %p168 = scmp.eq.s32.totalorder %s24, 0
      %p169 = por %p167, %p168
      %p170 = scmp.ne.s32.totalorder %s156, %s157
      %p171 = scmp.eq.s32.totalorder %s25, 1
      %p172 = por %p170, %p171
      %p174 = scmp.ne.s32.totalorder %s157, %s173
      %p175 = scmp.eq.s32.totalorder %s25, 0
      %p176 = por %p174, %p175
      %p177 = scmp.le.s32.totalorder 1, %s19
      %p178 = scmp.lt.s32.totalorder %s19, 3
      %p179 = pnand %p177, %p178
      %p180 = pneg %p179
      // Predicated region
      $region9: #{tpu_custom_call.1} parent=5 // pred_check
        _
      $region10: #{tpu_custom_call.1} parent=5 // pred_check_branch
        %182 = sbr.rel (%p179) target = $region12
      $region11: #{tpu_custom_call.1} parent=5 // pred_region
        %s183 = ssub.s32 %s19, 1
        // Predicated region
        $region13: #{tpu_custom_call.1} parent=11 // pred_check
          %p184 = pneg %p78
        $region14: #{tpu_custom_call.1} parent=11 // pred_check_branch
          %186 = sbr.rel (%p184) target = $region16
        $region15: #{tpu_custom_call.1} parent=11 // pred_region
          %s188 = ssub.s32 512, 512
          %189 = vsyncadd [#allocation7], %s188
          %s190 = sshll.u32 [#allocation6], 4
          %s191 = int_to_ptr.vmem [resolvable:$true] %s190
          %196 = dma.hbm_to_vmem [thread:$0]  %s1, 512, %s191, [#allocation7], 128, 128, 8
        $region16: #{tpu_custom_call.1} parent=11 // pred_fallthru
          _
        // Predicated region
        $region17: #{tpu_custom_call.1} parent=11 // pred_check
          %p197 = pneg %p99
        $region18: #{tpu_custom_call.1} parent=11 // pred_check_branch
          %199 = sbr.rel (%p197) target = $region20
        $region19: #{tpu_custom_call.1} parent=11 // pred_region
          %s201 = ssub.s32 512, 512
          %202 = vsyncadd [#allocation7], %s201
          %s203 = sshll.u32 [#allocation8], 4
          %s204 = int_to_ptr.vmem [resolvable:$true] %s203
          %209 = dma.hbm_to_vmem [thread:$0]  %s2, 512, %s204, [#allocation7], 128, 128, 8
        $region20: #{tpu_custom_call.1} parent=11 // pred_fallthru
          _
        // Predicated region
        $region21: #{tpu_custom_call.1} parent=11 // pred_check
          %p210 = pneg %p120
        $region22: #{tpu_custom_call.1} parent=11 // pred_check_branch
          %212 = sbr.rel (%p210) target = $region24
        $region23: #{tpu_custom_call.1} parent=11 // pred_region
          %s214 = ssub.s32 512, 512
          %215 = vsyncadd [#allocation10], %s214
          %s216 = sshll.u32 [#allocation9], 4
          %s217 = int_to_ptr.vmem [resolvable:$true] %s216
          %222 = dma.hbm_to_vmem [thread:$0]  %s3, 512, %s217, [#allocation10], 128, 128, 8
        $region24: #{tpu_custom_call.1} parent=11 // pred_fallthru
          _
        // Predicated region
        $region25: #{tpu_custom_call.1} parent=11 // pred_check
          %p223 = pneg %p141
        $region26: #{tpu_custom_call.1} parent=11 // pred_check_branch
          %225 = sbr.rel (%p223) target = $region28
        $region27: #{tpu_custom_call.1} parent=11 // pred_region
          _
        $region28: #{tpu_custom_call.1} parent=11 // pred_fallthru
          _
      $region12: #{tpu_custom_call.1} parent=5 // pred_fallthru
        _
      %p226 = scmp.lt.s32.totalorder %s19, 2
      // Predicated region
      $region29: #{tpu_custom_call.1} parent=5 // pred_check
        %p227 = pneg %p226
      $region30: #{tpu_custom_call.1} parent=5 // pred_check_branch
        %229 = sbr.rel (%p227) target = $region32
      $region31: #{tpu_custom_call.1} parent=5 // pred_region
        // Predicated region
        $region33: #{tpu_custom_call.1} parent=31 // pred_check
          %p230 = pneg %p51
        $region34: #{tpu_custom_call.1} parent=31 // pred_check_branch
          %232 = sbr.rel (%p230) target = $region36
        $region35: #{tpu_custom_call.1} parent=31 // pred_region
          %s233 = sand.u32 %s41, 1
          %s234 = scalar_lea.sflag [#allocation4], %s233
          %s235 = sand.u32 %s41, 1
          %s236 = smul.addr %s235, 8
          %s237 = scalar_lea.vmem [#allocation3], %s236
          %s239 = ssub.s32 128, 128
          %240 = vsyncadd %s234, %s239
          %s241 = smul.addr %s26, 128
          %s242 = scalar_lea.hbm %s0, %s241
          %s244 = sshll.u32 %s237, 4
          %s245 = int_to_ptr.vmem [resolvable:$true] %s244
          %247 = dma.hbm_to_vmem [thread:$0]  %s242, 128, %s245, %s234
        $region36: #{tpu_custom_call.1} parent=31 // pred_fallthru
          _
      $region32: #{tpu_custom_call.1} parent=5 // pred_fallthru
        _
      %p248 = scmp.le.s32.totalorder 1, %s19
      %p249 = scmp.lt.s32.totalorder %s19, 3
      %p250 = pnand %p248, %p249
      %p251 = pneg %p250
      // Predicated region
      $region37: #{tpu_custom_call.1} parent=5 // pred_check
        _
      $region38: #{tpu_custom_call.1} parent=5 // pred_check_branch
        %253 = sbr.rel (%p250) target = $region40
      $region39: #{tpu_custom_call.1} parent=5 // pred_region
        %s254 = ssub.s32 %s19, 1
        %s255 = sand.u32 %s44, 1
        %s256 = scalar_lea.sflag [#allocation4], %s255
        %s257 = sand.u32 %s44, 1
        %s258 = smul.addr %s257, 8
        %s259 = scalar_lea.vmem [#allocation3], %s258
        // Predicated region
        $region41: #{tpu_custom_call.1} parent=39 // pred_check
          %p260 = pneg %p57
        $region42: #{tpu_custom_call.1} parent=39 // pred_check_branch
          %262 = sbr.rel (%p260) target = $region44
        $region43: #{tpu_custom_call.1} parent=39 // pred_region
          %263 = dma.done %s256, 128
        $region44: #{tpu_custom_call.1} parent=39 // pred_fallthru
          _
        // Predicated region
        $region45: #{tpu_custom_call.1} parent=39 // pred_check
          %p264 = pneg %p78
        $region46: #{tpu_custom_call.1} parent=39 // pred_check_branch
          %266 = sbr.rel (%p264) target = $region48
        $region47: #{tpu_custom_call.1} parent=39 // pred_region
          %267 = dma.done [#allocation7], 512
        $region48: #{tpu_custom_call.1} parent=39 // pred_fallthru
          _
        // Predicated region
        $region49: #{tpu_custom_call.1} parent=39 // pred_check
          %p268 = pneg %p99
        $region50: #{tpu_custom_call.1} parent=39 // pred_check_branch
          %270 = sbr.rel (%p268) target = $region52
        $region51: #{tpu_custom_call.1} parent=39 // pred_region
          %271 = dma.done [#allocation7], 512
        $region52: #{tpu_custom_call.1} parent=39 // pred_fallthru
          _
        // Predicated region
        $region53: #{tpu_custom_call.1} parent=39 // pred_check
          %p272 = pneg %p120
        $region54: #{tpu_custom_call.1} parent=39 // pred_check_branch
          %274 = sbr.rel (%p272) target = $region56
        $region55: #{tpu_custom_call.1} parent=39 // pred_region
          %275 = dma.done [#allocation10], 512
        $region56: #{tpu_custom_call.1} parent=39 // pred_fallthru
          _
        %s276 = sand.u32 %s44, 1
        %s277 = scalar_lea.sflag [#allocation4], %s276
        %s278 = sand.u32 %s44, 1
        %s279 = smul.addr %s278, 8
        %s280 = scalar_lea.vmem [#allocation3], %s279
        %p281 = pneg %p57
        %p282 = pneg %p54
        %p283 = pneg %p78
        %p284 = pneg %p75
        %p285 = pneg %p99
        %p286 = pneg %p96
        %p287 = pneg %p120
        %p288 = pneg %p117
        %p289 = pneg %p141
        %p290 = pneg %p138
        %p291 = pneg %p169
        %p292 = pneg %p166
        %s293 = sand.u32 %s156, 1
        %s294 = scalar_lea.sflag [#allocation5], %s293
        %s295 = sand.u32 %s156, 1
        %s296 = smul.addr %s295, 8
        %s297 = scalar_lea.vmem [#allocation11], %s296
        %p298 = scmp.eq.s32.totalorder %s29, 0
        // Predicated region
        $region57: #{tpu_custom_call.1} parent=39 // pred_check
          %p299 = pneg %p298
        $region58: #{tpu_custom_call.1} parent=39 // pred_check_branch
          %301 = sbr.rel (%p299) target = $region60
        $region59: #{tpu_custom_call.1} parent=39 // pred_region
          %v302 = vld [vmem:[%s259] sm:$0xff]
          %v303 = vld [vmem:[#allocation8] sm:$0xff]
          %v304 = vld [vmem:[#allocation8 + $0x8] sm:$0xff]
          %v305 = vld [vmem:[#allocation8 + $0x10] sm:$0xff]
          %v306 = vld [vmem:[#allocation8 + $0x18] sm:$0xff]
          %vm307 = vcmask 261120
          %v309 = vsel %vm307, %v302, 0
          %311 = vmatprep.subr.mxu0 0.0
          %312 = vmatpush1.msra.mxu0 0.0
          %313 = vmatprep.subr.mxu0 0.0
          %314 = vmatpush1.msra.mxu0 0.0
          %315 = vmatprep.subr.mxu0 0.0
          %316 = vmatpush1.msra.mxu0 0.0
          %317 = vmatprep.subr.mxu0 0.0
          %318 = vmatpush1.msra.mxu0 0.0
          %319 = vmatprep.subr.mxu0 0.0
          %320 = vmatpush1.msra.mxu0 0.0
          %321 = vmatprep.subr.mxu0 0.0
          %322 = vmatpush1.msra.mxu0 0.0
          %323 = vmatprep.subr.mxu0 0.0
          %324 = vmatpush1.msra.mxu0 0.0
          %325 = vmatprep.subr.mxu0 0.0
          %326 = vmatpush1.msra.mxu0 0.0
          %327 = vmatprep.subr.mxu0 0.0
          %328 = vmatpush1.msra.mxu0 0.0
          %329 = vmatprep.subr.mxu0 0.0
          %330 = vmatpush1.msra.mxu0 0.0
          %331 = vmatprep.subr.mxu0 0.0
          %332 = vmatpush1.msra.mxu0 0.0
          %333 = vmatprep.subr.mxu0 0.0
          %334 = vmatpush1.msra.mxu0 0.0
          %335 = vmatprep.subr.mxu0 0.0
          %336 = vmatpush1.msra.mxu0 %v306
          %337 = vmatprep.subr.mxu0 0.0
          %338 = vmatpush1.msra.mxu0 %v305
          %339 = vmatprep.subr.mxu0 0.0
          %340 = vmatpush1.msra.mxu0 %v304
          %341 = vmatprep.subr.mxu0 0.0
          %342 = vmatpush1.msra.mxu0 %v303
          %343 = vmatprep.subr.mxu0 0.0
          %344 = vmatpush2.msra.mxu0 0.0
          %345 = vmatprep.subr.mxu0 0.0
          %346 = vmatpush2.msra.mxu0 0.0
          %347 = vmatprep.subr.mxu0 0.0
          %348 = vmatpush2.msra.mxu0 0.0
          %349 = vmatprep.subr.mxu0 0.0
          %350 = vmatpush2.msra.mxu0 0.0
          %351 = vmatprep.subr.mxu0 0.0
          %352 = vmatpush2.msra.mxu0 0.0
          %353 = vmatprep.subr.mxu0 0.0
          %354 = vmatpush2.msra.mxu0 0.0
          %355 = vmatprep.subr.mxu0 0.0
          %356 = vmatpush2.msra.mxu0 0.0
          %357 = vmatprep.subr.mxu0 0.0
          %358 = vmatpush2.msra.mxu0 0.0
          %359 = vmatprep.subr.mxu0 0.0
          %360 = vmatpush2.msra.mxu0 0.0
          %361 = vmatprep.subr.mxu0 0.0
          %362 = vmatpush2.msra.mxu0 0.0
          %363 = vmatprep.subr.mxu0 0.0
          %364 = vmatpush2.msra.mxu0 0.0
          %365 = vmatprep.subr.mxu0 0.0
          %366 = vmatpush2.msra.mxu0 0.0
          %367 = vmatprep.subr.mxu0 0.0
          %368 = vmatpush2.msra.mxu0 0.0
          %369 = vmatprep.subr.mxu0 0.0
          %370 = vmatpush2.msra.mxu0 0.0
          %371 = vmatprep.subr.mxu0 0.0
          %372 = vmatpush2.msra.mxu0 0.0
          %373 = vmatprep.subr.mxu0 0.0
          %374 = vmatpush2.msra.mxu0 0.0
          %375 = vmatprep.mubr.f32.mxu0 0.0
          %376 = vmatmul.mubr.f32.gmra.mxu0 %v309
          %v377 = vpop.f32.mrf.mxu0
          %v378 = vadd.f32 0.0, %v377
          %v379 = vpop.f32.mrf.mxu0
          %380 = vdwg.mxu0
          %382 = vrot.lane.b32.xlu0 %v378, 96
          %v383 = vpop.permute.xlu0 %382
          %v385 = vcombine.high %v378, 0.0
          %v387 = vunpack.c.l.s4 1983009808
          %v388 = vunpack.c.0.s8 %v387
          %v389 = vlaneseq
          %v390 = vshrl.u32 %v389, 7
          %v391 = vsub.s32 %v388, %v390
          %v392 = vrot.slane %v378, %v391
          %v394 = vunpack.c.l.s4 1983009808
          %v395 = vunpack.c.0.s8 %v394
          %v396 = vlaneseq
          %v397 = vshrl.u32 %v396, 7
          %v398 = vsub.s32 %v395, %v397
          %v399 = vrot.slane %v385, %v398
          %v400 = vcombine.high %v383, 0.0
          %v402 = vunpack.c.l.s4 1983009808
          %v403 = vunpack.c.0.s8 %v402
          %v404 = vlaneseq
          %v405 = vshrl.u32 %v404, 7
          %v406 = vsub.s32 %v403, %v405
          %v407 = vrot.slane %v383, %v406
          %v409 = vunpack.c.l.s4 1983009808
          %v410 = vunpack.c.0.s8 %v409
          %v411 = vlaneseq
          %v412 = vshrl.u32 %v411, 7
          %v413 = vsub.s32 %v410, %v412
          %v414 = vrot.slane %v400, %v413
          %v415 = vcombine.low %v392, %v407
          %v416 = vcombine.high %v392, %v407
          %v418 = vunpack.c.l.s4 1934713408
          %v419 = vunpack.c.0.s8 %v418
          %v420 = vlaneseq
          %v421 = vshrl.u32 %v420, 7
          %v422 = vsub.s32 %v419, %v421
          %v423 = vrot.slane %v415, %v422
          %v425 = vunpack.c.l.s4 1934713408
          %v426 = vunpack.c.0.s8 %v425
          %v427 = vlaneseq
          %v428 = vshrl.u32 %v427, 7
          %v429 = vsub.s32 %v426, %v428
          %v430 = vrot.slane %v416, %v429
          %v431 = vcombine.low %v399, %v414
          %v432 = vcombine.high %v399, %v414
          %v434 = vunpack.c.l.s4 1934713408
          %v435 = vunpack.c.0.s8 %v434
          %v436 = vlaneseq
          %v437 = vshrl.u32 %v436, 7
          %v438 = vsub.s32 %v435, %v437
          %v439 = vrot.slane %v431, %v438
          %v441 = vunpack.c.l.s4 1934713408
          %v442 = vunpack.c.0.s8 %v441
          %v443 = vlaneseq
          %v444 = vshrl.u32 %v443, 7
          %v445 = vsub.s32 %v442, %v444
          %v446 = vrot.slane %v432, %v445
          %v447 = vcombine.high %v423, 0.0
          %v448 = vcombine.high %v430, 0.0
          %v449 = vcombine.high %v439, 0.0
          %v450 = vcombine.high %v446, 0.0
          %v451 = vcombine.low %v423, %v430
          %v453 = vunpack.c.l.s4 1983009808
          %v454 = vunpack.c.0.s8 %v453
          %v455 = vlaneseq
          %v456 = vshrl.u32 %v455, 7
          %v457 = vsub.s32 %v454, %v456
          %v458 = vrot.slane %v451, %v457
          %v459 = vcombine.low %v447, %v448
          %v461 = vunpack.c.l.s4 1983009808
          %v462 = vunpack.c.0.s8 %v461
          %v463 = vlaneseq
          %v464 = vshrl.u32 %v463, 7
          %v465 = vsub.s32 %v462, %v464
          %v466 = vrot.slane %v459, %v465
          %v467 = vcombine.low %v439, %v446
          %v469 = vunpack.c.l.s4 1983009808
          %v470 = vunpack.c.0.s8 %v469
          %v471 = vlaneseq
          %v472 = vshrl.u32 %v471, 7
          %v473 = vsub.s32 %v470, %v472
          %v474 = vrot.slane %v467, %v473
          %v475 = vcombine.low %v449, %v450
          %v477 = vunpack.c.l.s4 1983009808
          %v478 = vunpack.c.0.s8 %v477
          %v479 = vlaneseq
          %v480 = vshrl.u32 %v479, 7
          %v481 = vsub.s32 %v478, %v480
          %v482 = vrot.slane %v475, %v481
          %v483 = vcombine.low %v458, %v466
          %v485 = vunpack.c.l.s4 1934713408
          %v486 = vunpack.c.0.s8 %v485
          %v487 = vlaneseq
          %v488 = vshrl.u32 %v487, 7
          %v489 = vsub.s32 %v486, %v488
          %v490 = vrot.slane %v483, %v489
          %v491 = vcombine.low %v474, %v482
          %v493 = vunpack.c.l.s4 1934713408
          %v494 = vunpack.c.0.s8 %v493
          %v495 = vlaneseq
          %v496 = vshrl.u32 %v495, 7
          %v497 = vsub.s32 %v494, %v496
          %v498 = vrot.slane %v491, %v497
          %v499 = vcombine.low %v490, %v498
          %v500 = vcombine.high %v490, %v498
          %501 = vst.msk [vmem:[#allocation2] sm:$0xff] %vm307, %v499
          %502 = vst.msk [vmem:[#allocation2 + $0x8] sm:$0xff] %vm307, %v500
        $region60: #{tpu_custom_call.1} parent=39 // pred_fallthru
          _
        %s503 = smul.u32 %s29, 8
        %s504 = scalar_lea.vmem %s259, %s503 [#allocation3]
        %v505 = vld [vmem:[%s504] sm:$0xff]
        %v506 = vld [vmem:[#allocation6] sm:$0xff]
        %v507 = vld [vmem:[#allocation6 + $0x8] sm:$0xff]
        %v508 = vld [vmem:[#allocation6 + $0x10] sm:$0xff]
        %v509 = vld [vmem:[#allocation6 + $0x18] sm:$0xff]
        %vm510 = vcmask 261120
        %v512 = vsel %vm510, %v505, 0
        %514 = vmatprep.subr.mxu0 0.0
        %515 = vmatpush1.msra.mxu0 0.0
        %516 = vmatprep.subr.mxu0 0.0
        %517 = vmatpush1.msra.mxu0 0.0
        %518 = vmatprep.subr.mxu0 0.0
        %519 = vmatpush1.msra.mxu0 0.0
        %520 = vmatprep.subr.mxu0 0.0
        %521 = vmatpush1.msra.mxu0 0.0
        %522 = vmatprep.subr.mxu0 0.0
        %523 = vmatpush1.msra.mxu0 0.0
        %524 = vmatprep.subr.mxu0 0.0
        %525 = vmatpush1.msra.mxu0 0.0
        %526 = vmatprep.subr.mxu0 0.0
        %527 = vmatpush1.msra.mxu0 0.0
        %528 = vmatprep.subr.mxu0 0.0
        %529 = vmatpush1.msra.mxu0 0.0
        %530 = vmatprep.subr.mxu0 0.0
        %531 = vmatpush1.msra.mxu0 0.0
        %532 = vmatprep.subr.mxu0 0.0
        %533 = vmatpush1.msra.mxu0 0.0
        %534 = vmatprep.subr.mxu0 0.0
        %535 = vmatpush1.msra.mxu0 0.0
        %536 = vmatprep.subr.mxu0 0.0
        %537 = vmatpush1.msra.mxu0 0.0
        %538 = vmatprep.subr.mxu0 0.0
        %539 = vmatpush1.msra.mxu0 %v509
        %540 = vmatprep.subr.mxu0 0.0
        %541 = vmatpush1.msra.mxu0 %v508
        %542 = vmatprep.subr.mxu0 0.0
        %543 = vmatpush1.msra.mxu0 %v507
        %544 = vmatprep.subr.mxu0 0.0
        %545 = vmatpush1.msra.mxu0 %v506
        %546 = vmatprep.subr.mxu0 0.0
        %547 = vmatpush2.msra.mxu0 0.0
        %548 = vmatprep.subr.mxu0 0.0
        %549 = vmatpush2.msra.mxu0 0.0
        %550 = vmatprep.subr.mxu0 0.0
        %551 = vmatpush2.msra.mxu0 0.0
        %552 = vmatprep.subr.mxu0 0.0
        %553 = vmatpush2.msra.mxu0 0.0
        %554 = vmatprep.subr.mxu0 0.0
        %555 = vmatpush2.msra.mxu0 0.0
        %556 = vmatprep.subr.mxu0 0.0
        %557 = vmatpush2.msra.mxu0 0.0
        %558 = vmatprep.subr.mxu0 0.0
        %559 = vmatpush2.msra.mxu0 0.0
        %560 = vmatprep.subr.mxu0 0.0
        %561 = vmatpush2.msra.mxu0 0.0
        %562 = vmatprep.subr.mxu0 0.0
        %563 = vmatpush2.msra.mxu0 0.0
        %564 = vmatprep.subr.mxu0 0.0
        %565 = vmatpush2.msra.mxu0 0.0
        %566 = vmatprep.subr.mxu0 0.0
        %567 = vmatpush2.msra.mxu0 0.0
        %568 = vmatprep.subr.mxu0 0.0
        %569 = vmatpush2.msra.mxu0 0.0
        %570 = vmatprep.subr.mxu0 0.0
        %571 = vmatpush2.msra.mxu0 0.0
        %572 = vmatprep.subr.mxu0 0.0
        %573 = vmatpush2.msra.mxu0 0.0
        %574 = vmatprep.subr.mxu0 0.0
        %575 = vmatpush2.msra.mxu0 0.0
        %576 = vmatprep.subr.mxu0 0.0
        %577 = vmatpush2.msra.mxu0 0.0
        %578 = vmatprep.mubr.f32.mxu0 0.0
        %579 = vmatmul.mubr.f32.gmra.mxu0 %v512
        %v580 = vpop.f32.mrf.mxu0
        %v581 = vadd.f32 0.0, %v580
        %v582 = vpop.f32.mrf.mxu0
        %583 = vdwg.mxu0
        %v584 = vmul.f32 %v581, 0.25
        %586 = vrot.lane.b32.xlu0 %v584, 112
        %v587 = vpop.permute.xlu0 %586
        %v589 = vcombine.high %v584, 0.0
        %v591 = vunpack.c.l.s4 1983009808
        %v592 = vunpack.c.0.s8 %v591
        %v593 = vlaneseq
        %v594 = vshrl.u32 %v593, 7
        %v595 = vsub.s32 %v592, %v594
        %v596 = vrot.slane %v584, %v595
        %v598 = vunpack.c.l.s4 1983009808
        %v599 = vunpack.c.0.s8 %v598
        %v600 = vlaneseq
        %v601 = vshrl.u32 %v600, 7
        %v602 = vsub.s32 %v599, %v601
        %v603 = vrot.slane %v589, %v602
        %v604 = vcombine.high %v587, 0.0
        %v606 = vunpack.c.l.s4 1983009808
        %v607 = vunpack.c.0.s8 %v606
        %v608 = vlaneseq
        %v609 = vshrl.u32 %v608, 7
        %v610 = vsub.s32 %v607, %v609
        %v611 = vrot.slane %v587, %v610
        %v613 = vunpack.c.l.s4 1983009808
        %v614 = vunpack.c.0.s8 %v613
        %v615 = vlaneseq
        %v616 = vshrl.u32 %v615, 7
        %v617 = vsub.s32 %v614, %v616
        %v618 = vrot.slane %v604, %v617
        %v619 = vcombine.low %v596, %v611
        %v620 = vcombine.high %v596, %v611
        %v622 = vunpack.c.l.s4 1934713408
        %v623 = vunpack.c.0.s8 %v622
        %v624 = vlaneseq
        %v625 = vshrl.u32 %v624, 7
        %v626 = vsub.s32 %v623, %v625
        %v627 = vrot.slane %v619, %v626
        %v629 = vunpack.c.l.s4 1934713408
        %v630 = vunpack.c.0.s8 %v629
        %v631 = vlaneseq
        %v632 = vshrl.u32 %v631, 7
        %v633 = vsub.s32 %v630, %v632
        %v634 = vrot.slane %v620, %v633
        %v635 = vcombine.low %v603, %v618
        %v636 = vcombine.high %v603, %v618
        %v638 = vunpack.c.l.s4 1934713408
        %v639 = vunpack.c.0.s8 %v638
        %v640 = vlaneseq
        %v641 = vshrl.u32 %v640, 7
        %v642 = vsub.s32 %v639, %v641
        %v643 = vrot.slane %v635, %v642
        %v645 = vunpack.c.l.s4 1934713408
        %v646 = vunpack.c.0.s8 %v645
        %v647 = vlaneseq
        %v648 = vshrl.u32 %v647, 7
        %v649 = vsub.s32 %v646, %v648
        %v650 = vrot.slane %v636, %v649
        %v651 = vcombine.high %v627, 0.0
        %v652 = vcombine.high %v634, 0.0
        %v653 = vcombine.high %v643, 0.0
        %v654 = vcombine.high %v650, 0.0
        %v655 = vcombine.low %v627, %v634
        %v657 = vunpack.c.l.s4 1983009808
        %v658 = vunpack.c.0.s8 %v657
        %v659 = vlaneseq
        %v660 = vshrl.u32 %v659, 7
        %v661 = vsub.s32 %v658, %v660
        %v662 = vrot.slane %v655, %v661
        %v663 = vcombine.low %v651, %v652
        %v665 = vunpack.c.l.s4 1983009808
        %v666 = vunpack.c.0.s8 %v665
        %v667 = vlaneseq
        %v668 = vshrl.u32 %v667, 7
        %v669 = vsub.s32 %v666, %v668
        %v670 = vrot.slane %v663, %v669
        %v671 = vcombine.low %v643, %v650
        %v673 = vunpack.c.l.s4 1983009808
        %v674 = vunpack.c.0.s8 %v673
        %v675 = vlaneseq
        %v676 = vshrl.u32 %v675, 7
        %v677 = vsub.s32 %v674, %v676
        %v678 = vrot.slane %v671, %v677
        %v679 = vcombine.low %v653, %v654
        %v681 = vunpack.c.l.s4 1983009808
        %v682 = vunpack.c.0.s8 %v681
        %v683 = vlaneseq
        %v684 = vshrl.u32 %v683, 7
        %v685 = vsub.s32 %v682, %v684
        %v686 = vrot.slane %v679, %v685
        %v687 = vcombine.low %v662, %v670
        %v689 = vunpack.c.l.s4 1934713408
        %v690 = vunpack.c.0.s8 %v689
        %v691 = vlaneseq
        %v692 = vshrl.u32 %v691, 7
        %v693 = vsub.s32 %v690, %v692
        %v694 = vrot.slane %v687, %v693
        %v695 = vcombine.low %v678, %v686
        %v697 = vunpack.c.l.s4 1934713408
        %v698 = vunpack.c.0.s8 %v697
        %v699 = vlaneseq
        %v700 = vshrl.u32 %v699, 7
        %v701 = vsub.s32 %v698, %v700
        %v702 = vrot.slane %v695, %v701
        %v703 = vcombine.low %v694, %v702
        %v704 = vcombine.high %v694, %v702
        %v705 = vld [vmem:[#allocation2] sm:$0xff]
        %v706 = vld [vmem:[#allocation2 + $0x8] sm:$0xff]
        %vm707 = vcmask 130048
        %v709 = vsel %vm707, %v703, 0
        %v712 = vsel %vm707, %v705, 0
        %714 = vmatprep.subr.mxu0 0.0
        %715 = vmatpush1.xpose.msra.mxu0 0.0
        %716 = vmatprep.subr.mxu0 0.0
        %717 = vmatpush1.xpose.msra.mxu0 0.0
        %718 = vmatprep.subr.mxu0 0.0
        %719 = vmatpush1.xpose.msra.mxu0 0.0
        %720 = vmatprep.subr.mxu0 0.0
        %721 = vmatpush1.xpose.msra.mxu0 0.0
        %722 = vmatprep.subr.mxu0 0.0
        %723 = vmatpush1.xpose.msra.mxu0 0.0
        %724 = vmatprep.subr.mxu0 0.0
        %725 = vmatpush1.xpose.msra.mxu0 0.0
        %726 = vmatprep.subr.mxu0 0.0
        %727 = vmatpush1.xpose.msra.mxu0 0.0
        %728 = vmatprep.subr.mxu0 0.0
        %729 = vmatpush1.xpose.msra.mxu0 0.0
        %730 = vmatprep.subr.mxu0 0.0
        %731 = vmatpush1.xpose.msra.mxu0 0.0
        %732 = vmatprep.subr.mxu0 0.0
        %733 = vmatpush1.xpose.msra.mxu0 0.0
        %734 = vmatprep.subr.mxu0 0.0
        %735 = vmatpush1.xpose.msra.mxu0 0.0
        %736 = vmatprep.subr.mxu0 0.0
        %737 = vmatpush1.xpose.msra.mxu0 0.0
        %738 = vmatprep.subr.mxu0 0.0
        %739 = vmatpush1.xpose.msra.mxu0 0.0
        %740 = vmatprep.subr.mxu0 0.0
        %741 = vmatpush1.xpose.msra.mxu0 0.0
        %742 = vmatprep.subr.mxu0 0.0
        %743 = vmatpush1.xpose.msra.mxu0 0.0
        %744 = vmatprep.subr.mxu0 0.0
        %745 = vmatpush1.xpose.msra.mxu0 %v712
        %746 = vmatprep.subr.mxu0 0.0
        %747 = vmatpush2.xpose.msra.mxu0 0.0
        %748 = vmatprep.subr.mxu0 0.0
        %749 = vmatpush2.xpose.msra.mxu0 0.0
        %750 = vmatprep.subr.mxu0 0.0
        %751 = vmatpush2.xpose.msra.mxu0 0.0
        %752 = vmatprep.subr.mxu0 0.0
        %753 = vmatpush2.xpose.msra.mxu0 0.0
        %754 = vmatprep.subr.mxu0 0.0
        %755 = vmatpush2.xpose.msra.mxu0 0.0
        %756 = vmatprep.subr.mxu0 0.0
        %757 = vmatpush2.xpose.msra.mxu0 0.0
        %758 = vmatprep.subr.mxu0 0.0
        %759 = vmatpush2.xpose.msra.mxu0 0.0
        %760 = vmatprep.subr.mxu0 0.0
        %761 = vmatpush2.xpose.msra.mxu0 0.0
        %762 = vmatprep.subr.mxu0 0.0
        %763 = vmatpush2.xpose.msra.mxu0 0.0
        %764 = vmatprep.subr.mxu0 0.0
        %765 = vmatpush2.xpose.msra.mxu0 0.0
        %766 = vmatprep.subr.mxu0 0.0
        %767 = vmatpush2.xpose.msra.mxu0 0.0
        %768 = vmatprep.subr.mxu0 0.0
        %769 = vmatpush2.xpose.msra.mxu0 0.0
        %770 = vmatprep.subr.mxu0 0.0
        %771 = vmatpush2.xpose.msra.mxu0 0.0
        %772 = vmatprep.subr.mxu0 0.0
        %773 = vmatpush2.xpose.msra.mxu0 0.0
        %774 = vmatprep.subr.mxu0 0.0
        %775 = vmatpush2.xpose.msra.mxu0 0.0
        %776 = vmatprep.subr.mxu0 0.0
        %777 = vmatpush2.xpose.msra.mxu0 0.0
        %778 = vmatprep.mubr.f32.mxu0 0.0
        %779 = vmatmul.mubr.f32.gmra.mxu0 %v709
        %v780 = vpop.f32.mrf.mxu0
        %v781 = vadd.f32 0.0, %v780
        %v782 = vpop.f32.mrf.mxu0
        %783 = vdwg.mxu0
        %v785 = vsel %vm707, %v704, 0
        %v788 = vsel %vm707, %v706, 0
        %790 = vmatprep.subr.mxu0 0.0
        %791 = vmatpush1.xpose.msra.mxu0 0.0
        %792 = vmatprep.subr.mxu0 0.0
        %793 = vmatpush1.xpose.msra.mxu0 0.0
        %794 = vmatprep.subr.mxu0 0.0
        %795 = vmatpush1.xpose.msra.mxu0 0.0
        %796 = vmatprep.subr.mxu0 0.0
        %797 = vmatpush1.xpose.msra.mxu0 0.0
        %798 = vmatprep.subr.mxu0 0.0
        %799 = vmatpush1.xpose.msra.mxu0 0.0
        %800 = vmatprep.subr.mxu0 0.0
        %801 = vmatpush1.xpose.msra.mxu0 0.0
        %802 = vmatprep.subr.mxu0 0.0
        %803 = vmatpush1.xpose.msra.mxu0 0.0
        %804 = vmatprep.subr.mxu0 0.0
        %805 = vmatpush1.xpose.msra.mxu0 0.0
        %806 = vmatprep.subr.mxu0 0.0
        %807 = vmatpush1.xpose.msra.mxu0 0.0
        %808 = vmatprep.subr.mxu0 0.0
        %809 = vmatpush1.xpose.msra.mxu0 0.0
        %810 = vmatprep.subr.mxu0 0.0
        %811 = vmatpush1.xpose.msra.mxu0 0.0
        %812 = vmatprep.subr.mxu0 0.0
        %813 = vmatpush1.xpose.msra.mxu0 0.0
        %814 = vmatprep.subr.mxu0 0.0
        %815 = vmatpush1.xpose.msra.mxu0 0.0
        %816 = vmatprep.subr.mxu0 0.0
        %817 = vmatpush1.xpose.msra.mxu0 0.0
        %818 = vmatprep.subr.mxu0 0.0
        %819 = vmatpush1.xpose.msra.mxu0 0.0
        %820 = vmatprep.subr.mxu0 0.0
        %821 = vmatpush1.xpose.msra.mxu0 %v788
        %822 = vmatprep.subr.mxu0 0.0
        %823 = vmatpush2.xpose.msra.mxu0 0.0
        %824 = vmatprep.subr.mxu0 0.0
        %825 = vmatpush2.xpose.msra.mxu0 0.0
        %826 = vmatprep.subr.mxu0 0.0
        %827 = vmatpush2.xpose.msra.mxu0 0.0
        %828 = vmatprep.subr.mxu0 0.0
        %829 = vmatpush2.xpose.msra.mxu0 0.0
        %830 = vmatprep.subr.mxu0 0.0
        %831 = vmatpush2.xpose.msra.mxu0 0.0
        %832 = vmatprep.subr.mxu0 0.0
        %833 = vmatpush2.xpose.msra.mxu0 0.0
        %834 = vmatprep.subr.mxu0 0.0
        %835 = vmatpush2.xpose.msra.mxu0 0.0
        %836 = vmatprep.subr.mxu0 0.0
        %837 = vmatpush2.xpose.msra.mxu0 0.0
        %838 = vmatprep.subr.mxu0 0.0
        %839 = vmatpush2.xpose.msra.mxu0 0.0
        %840 = vmatprep.subr.mxu0 0.0
        %841 = vmatpush2.xpose.msra.mxu0 0.0
        %842 = vmatprep.subr.mxu0 0.0
        %843 = vmatpush2.xpose.msra.mxu0 0.0
        %844 = vmatprep.subr.mxu0 0.0
        %845 = vmatpush2.xpose.msra.mxu0 0.0
        %846 = vmatprep.subr.mxu0 0.0
        %847 = vmatpush2.xpose.msra.mxu0 0.0
        %848 = vmatprep.subr.mxu0 0.0
        %849 = vmatpush2.xpose.msra.mxu0 0.0
        %850 = vmatprep.subr.mxu0 0.0
        %851 = vmatpush2.xpose.msra.mxu0 0.0
        %852 = vmatprep.subr.mxu0 0.0
        %853 = vmatpush2.xpose.msra.mxu0 0.0
        %854 = vmatprep.mubr.f32.mxu0 0.0
        %855 = vmatmul.mubr.f32.gmra.mxu0 %v785
        %v856 = vpop.f32.mrf.mxu0
        %v857 = vadd.f32 0.0, %v856
        %v858 = vpop.f32.mrf.mxu0
        %859 = vdwg.mxu0
        %vm860 = vcmask 64512
        %v861 = vsel %vm860, %v781, -inf
        %862 = vmax.xlane.f32.xlu0 %v861
        %v863 = vpop.xlane.xlu0 %862
        %v864 = vsel %vm860, %v857, -inf
        %865 = vmax.xlane.f32.xlu0 %v864
        %v866 = vpop.xlane.xlu0 %865
        %v867 = vsub.f32 %v781, %v863
        %v868 = vsub.f32 %v857, %v866
        %v869 = vmul.f32 %v867, 1.442695
        %v870 = vpow.pop %v869
        %v871 = vmul.f32 %v868, 1.442695
        %v872 = vpow.pop %v871
        %v873 = vsel %vm860, %v870, 0.0
        %874 = vadd.xlane.f32.xlu0 %v873
        %v875 = vpop.xlane.xlu0 %874
        %v876 = vsel %vm860, %v872, 0.0
        %877 = vadd.xlane.f32.xlu0 %v876
        %v878 = vpop.xlane.xlu0 %877
        %879 = vrot.lane.b32.xlu0 %v705, 112
        %v880 = vpop.permute.xlu0 %879
        %v883 = vsel %vm860, %v870, 0
        %885 = vmatprep.subr.mxu0 0.0
        %886 = vmatpush1.msra.mxu0 0.0
        %887 = vmatprep.subr.mxu0 0.0
        %888 = vmatpush1.msra.mxu0 0.0
        %889 = vmatprep.subr.mxu0 0.0
        %890 = vmatpush1.msra.mxu0 0.0
        %891 = vmatprep.subr.mxu0 0.0
        %892 = vmatpush1.msra.mxu0 0.0
        %893 = vmatprep.subr.mxu0 0.0
        %894 = vmatpush1.msra.mxu0 0.0
        %895 = vmatprep.subr.mxu0 0.0
        %896 = vmatpush1.msra.mxu0 0.0
        %897 = vmatprep.subr.mxu0 0.0
        %898 = vmatpush1.msra.mxu0 0.0
        %899 = vmatprep.subr.mxu0 0.0
        %900 = vmatpush1.msra.mxu0 0.0
        %901 = vmatprep.subr.mxu0 0.0
        %902 = vmatpush1.msra.mxu0 0.0
        %903 = vmatprep.subr.mxu0 0.0
        %904 = vmatpush1.msra.mxu0 0.0
        %905 = vmatprep.subr.mxu0 0.0
        %906 = vmatpush1.msra.mxu0 0.0
        %907 = vmatprep.subr.mxu0 0.0
        %908 = vmatpush1.msra.mxu0 0.0
        %909 = vmatprep.subr.mxu0 0.0
        %910 = vmatpush1.msra.mxu0 0.0
        %911 = vmatprep.subr.mxu0 0.0
        %912 = vmatpush1.msra.mxu0 0.0
        %913 = vmatprep.subr.mxu0 0.0
        %914 = vmatpush1.msra.mxu0 0.0
        %915 = vmatprep.subr.mxu0 0.0
        %916 = vmatpush1.msra.mxu0 %v880
        %917 = vmatprep.subr.mxu0 0.0
        %918 = vmatpush2.msra.mxu0 0.0
        %919 = vmatprep.subr.mxu0 0.0
        %920 = vmatpush2.msra.mxu0 0.0
        %921 = vmatprep.subr.mxu0 0.0
        %922 = vmatpush2.msra.mxu0 0.0
        %923 = vmatprep.subr.mxu0 0.0
        %924 = vmatpush2.msra.mxu0 0.0
        %925 = vmatprep.subr.mxu0 0.0
        %926 = vmatpush2.msra.mxu0 0.0
        %927 = vmatprep.subr.mxu0 0.0
        %928 = vmatpush2.msra.mxu0 0.0
        %929 = vmatprep.subr.mxu0 0.0
        %930 = vmatpush2.msra.mxu0 0.0
        %931 = vmatprep.subr.mxu0 0.0
        %932 = vmatpush2.msra.mxu0 0.0
        %933 = vmatprep.subr.mxu0 0.0
        %934 = vmatpush2.msra.mxu0 0.0
        %935 = vmatprep.subr.mxu0 0.0
        %936 = vmatpush2.msra.mxu0 0.0
        %937 = vmatprep.subr.mxu0 0.0
        %938 = vmatpush2.msra.mxu0 0.0
        %939 = vmatprep.subr.mxu0 0.0
        %940 = vmatpush2.msra.mxu0 0.0
        %941 = vmatprep.subr.mxu0 0.0
        %942 = vmatpush2.msra.mxu0 0.0
        %943 = vmatprep.subr.mxu0 0.0
        %944 = vmatpush2.msra.mxu0 0.0
        %945 = vmatprep.subr.mxu0 0.0
        %946 = vmatpush2.msra.mxu0 0.0
        %947 = vmatprep.subr.mxu0 0.0
        %948 = vmatpush2.msra.mxu0 0.0
        %949 = vmatprep.mubr.f32.mxu0 0.0
        %950 = vmatmul.mubr.f32.gmra.mxu0 %v883
        %v951 = vpop.f32.mrf.mxu0
        %v952 = vadd.f32 0.0, %v951
        %v953 = vpop.f32.mrf.mxu0
        %954 = vdwg.mxu0
        %955 = vrot.lane.b32.xlu0 %v706, 112
        %v956 = vpop.permute.xlu0 %955
        %v959 = vsel %vm860, %v872, 0
        %961 = vmatprep.subr.mxu0 0.0
        %962 = vmatpush1.msra.mxu0 0.0
        %963 = vmatprep.subr.mxu0 0.0
        %964 = vmatpush1.msra.mxu0 0.0
        %965 = vmatprep.subr.mxu0 0.0
        %966 = vmatpush1.msra.mxu0 0.0
        %967 = vmatprep.subr.mxu0 0.0
        %968 = vmatpush1.msra.mxu0 0.0
        %969 = vmatprep.subr.mxu0 0.0
        %970 = vmatpush1.msra.mxu0 0.0
        %971 = vmatprep.subr.mxu0 0.0
        %972 = vmatpush1.msra.mxu0 0.0
        %973 = vmatprep.subr.mxu0 0.0
        %974 = vmatpush1.msra.mxu0 0.0
        %975 = vmatprep.subr.mxu0 0.0
        %976 = vmatpush1.msra.mxu0 0.0
        %977 = vmatprep.subr.mxu0 0.0
        %978 = vmatpush1.msra.mxu0 0.0
        %979 = vmatprep.subr.mxu0 0.0
        %980 = vmatpush1.msra.mxu0 0.0
        %981 = vmatprep.subr.mxu0 0.0
        %982 = vmatpush1.msra.mxu0 0.0
        %983 = vmatprep.subr.mxu0 0.0
        %984 = vmatpush1.msra.mxu0 0.0
        %985 = vmatprep.subr.mxu0 0.0
        %986 = vmatpush1.msra.mxu0 0.0
        %987 = vmatprep.subr.mxu0 0.0
        %988 = vmatpush1.msra.mxu0 0.0
        %989 = vmatprep.subr.mxu0 0.0
        %990 = vmatpush1.msra.mxu0 0.0
        %991 = vmatprep.subr.mxu0 0.0
        %992 = vmatpush1.msra.mxu0 %v956
        %993 = vmatprep.subr.mxu0 0.0
        %994 = vmatpush2.msra.mxu0 0.0
        %995 = vmatprep.subr.mxu0 0.0
        %996 = vmatpush2.msra.mxu0 0.0
        %997 = vmatprep.subr.mxu0 0.0
        %998 = vmatpush2.msra.mxu0 0.0
        %999 = vmatprep.subr.mxu0 0.0
        %1000 = vmatpush2.msra.mxu0 0.0
        %1001 = vmatprep.subr.mxu0 0.0
        %1002 = vmatpush2.msra.mxu0 0.0
        %1003 = vmatprep.subr.mxu0 0.0
        %1004 = vmatpush2.msra.mxu0 0.0
        %1005 = vmatprep.subr.mxu0 0.0
        %1006 = vmatpush2.msra.mxu0 0.0
        %1007 = vmatprep.subr.mxu0 0.0
        %1008 = vmatpush2.msra.mxu0 0.0
        %1009 = vmatprep.subr.mxu0 0.0
        %1010 = vmatpush2.msra.mxu0 0.0
        %1011 = vmatprep.subr.mxu0 0.0
        %1012 = vmatpush2.msra.mxu0 0.0
        %1013 = vmatprep.subr.mxu0 0.0
        %1014 = vmatpush2.msra.mxu0 0.0
        %1015 = vmatprep.subr.mxu0 0.0
        %1016 = vmatpush2.msra.mxu0 0.0
        %1017 = vmatprep.subr.mxu0 0.0
        %1018 = vmatpush2.msra.mxu0 0.0
        %1019 = vmatprep.subr.mxu0 0.0
        %1020 = vmatpush2.msra.mxu0 0.0
        %1021 = vmatprep.subr.mxu0 0.0
        %1022 = vmatpush2.msra.mxu0 0.0
        %1023 = vmatprep.subr.mxu0 0.0
        %1024 = vmatpush2.msra.mxu0 0.0
        %1025 = vmatprep.mubr.f32.mxu0 0.0
        %1026 = vmatmul.mubr.f32.gmra.mxu0 %v959
        %v1027 = vpop.f32.mrf.mxu0
        %v1028 = vadd.f32 0.0, %v1027
        %v1029 = vpop.f32.mrf.mxu0
        %1030 = vdwg.mxu0
        %v1031 = vrcp.pop %v875
        %v1032 = vrcp.pop %v878
        %v1033 = vmul.f32 %v952, %v1031
        %v1034 = vmul.f32 %v1028, %v1032
        %v1035 = vcombine.high %v1033, 0.0
        %v1037 = vunpack.c.l.s4 1983009808
        %v1038 = vunpack.c.0.s8 %v1037
        %v1039 = vlaneseq
        %v1040 = vshrl.u32 %v1039, 7
        %v1041 = vsub.s32 %v1038, %v1040
        %v1042 = vrot.slane %v1033, %v1041
        %v1044 = vunpack.c.l.s4 1983009808
        %v1045 = vunpack.c.0.s8 %v1044
        %v1046 = vlaneseq
        %v1047 = vshrl.u32 %v1046, 7
        %v1048 = vsub.s32 %v1045, %v1047
        %v1049 = vrot.slane %v1035, %v1048
        %v1050 = vcombine.high %v1034, 0.0
        %v1052 = vunpack.c.l.s4 1983009808
        %v1053 = vunpack.c.0.s8 %v1052
        %v1054 = vlaneseq
        %v1055 = vshrl.u32 %v1054, 7
        %v1056 = vsub.s32 %v1053, %v1055
        %v1057 = vrot.slane %v1034, %v1056
        %v1059 = vunpack.c.l.s4 1983009808
        %v1060 = vunpack.c.0.s8 %v1059
        %v1061 = vlaneseq
        %v1062 = vshrl.u32 %v1061, 7
        %v1063 = vsub.s32 %v1060, %v1062
        %v1064 = vrot.slane %v1050, %v1063
        %v1065 = vcombine.low %v1042, %v1057
        %v1066 = vcombine.high %v1042, %v1057
        %v1068 = vunpack.c.l.s4 1934713408
        %v1069 = vunpack.c.0.s8 %v1068
        %v1070 = vlaneseq
        %v1071 = vshrl.u32 %v1070, 7
        %v1072 = vsub.s32 %v1069, %v1071
        %v1073 = vrot.slane %v1065, %v1072
        %v1075 = vunpack.c.l.s4 1934713408
        %v1076 = vunpack.c.0.s8 %v1075
        %v1077 = vlaneseq
        %v1078 = vshrl.u32 %v1077, 7
        %v1079 = vsub.s32 %v1076, %v1078
        %v1080 = vrot.slane %v1066, %v1079
        %v1081 = vcombine.low %v1049, %v1064
        %v1082 = vcombine.high %v1049, %v1064
        %v1084 = vunpack.c.l.s4 1934713408
        %v1085 = vunpack.c.0.s8 %v1084
        %v1086 = vlaneseq
        %v1087 = vshrl.u32 %v1086, 7
        %v1088 = vsub.s32 %v1085, %v1087
        %v1089 = vrot.slane %v1081, %v1088
        %v1091 = vunpack.c.l.s4 1934713408
        %v1092 = vunpack.c.0.s8 %v1091
        %v1093 = vlaneseq
        %v1094 = vshrl.u32 %v1093, 7
        %v1095 = vsub.s32 %v1092, %v1094
        %v1096 = vrot.slane %v1082, %v1095
        %v1097 = vcombine.high %v1073, 0.0
        %v1098 = vcombine.high %v1080, 0.0
        %v1099 = vcombine.high %v1089, 0.0
        %v1100 = vcombine.high %v1096, 0.0
        %v1101 = vcombine.low %v1073, %v1080
        %v1103 = vunpack.c.l.s4 1983009808
        %v1104 = vunpack.c.0.s8 %v1103
        %v1105 = vlaneseq
        %v1106 = vshrl.u32 %v1105, 7
        %v1107 = vsub.s32 %v1104, %v1106
        %v1108 = vrot.slane %v1101, %v1107
        %v1109 = vcombine.low %v1097, %v1098
        %v1111 = vunpack.c.l.s4 1983009808
        %v1112 = vunpack.c.0.s8 %v1111
        %v1113 = vlaneseq
        %v1114 = vshrl.u32 %v1113, 7
        %v1115 = vsub.s32 %v1112, %v1114
        %v1116 = vrot.slane %v1109, %v1115
        %v1117 = vcombine.low %v1089, %v1096
        %v1119 = vunpack.c.l.s4 1983009808
        %v1120 = vunpack.c.0.s8 %v1119
        %v1121 = vlaneseq
        %v1122 = vshrl.u32 %v1121, 7
        %v1123 = vsub.s32 %v1120, %v1122
        %v1124 = vrot.slane %v1117, %v1123
        %v1125 = vcombine.low %v1099, %v1100
        %v1127 = vunpack.c.l.s4 1983009808
        %v1128 = vunpack.c.0.s8 %v1127
        %v1129 = vlaneseq
        %v1130 = vshrl.u32 %v1129, 7
        %v1131 = vsub.s32 %v1128, %v1130
        %v1132 = vrot.slane %v1125, %v1131
        %v1133 = vcombine.low %v1108, %v1116
        %v1135 = vunpack.c.l.s4 1934713408
        %v1136 = vunpack.c.0.s8 %v1135
        %v1137 = vlaneseq
        %v1138 = vshrl.u32 %v1137, 7
        %v1139 = vsub.s32 %v1136, %v1138
        %v1140 = vrot.slane %v1133, %v1139
        %v1141 = vcombine.low %v1124, %v1132
        %v1143 = vunpack.c.l.s4 1934713408
        %v1144 = vunpack.c.0.s8 %v1143
        %v1145 = vlaneseq
        %v1146 = vshrl.u32 %v1145, 7
        %v1147 = vsub.s32 %v1144, %v1146
        %v1148 = vrot.slane %v1141, %v1147
        %v1149 = vcombine.low %v1140, %v1148
        %v1150 = vcombine.high %v1140, %v1148
        %1152 = vrot.lane.b32.xlu0 %v1150, 16
        %v1153 = vpop.permute.xlu0 %1152
        %v1155 = vsel %vm707, %v1149, %v1153
        %v1156 = vld [vmem:[#allocation9] sm:$0xff]
        %v1157 = vld [vmem:[#allocation9 + $0x8] sm:$0xff]
        %v1158 = vld [vmem:[#allocation9 + $0x10] sm:$0xff]
        %v1159 = vld [vmem:[#allocation9 + $0x18] sm:$0xff]
        %v1160 = vld [vmem:[%s4] sm:$0x1]
        %v1162 = vlaneseq
        %v1163 = vshrl.u32 %v1162, 7
        %v1164 = vsub.s32 0, %v1163
        %v1165 = vrot.slane %v1160, %v1164
        %v1168 = vsel %vm510, %v1155, 0
        %1170 = vmatprep.subr.mxu0 0.0
        %1171 = vmatpush1.msra.mxu0 0.0
        %1172 = vmatprep.subr.mxu0 0.0
        %1173 = vmatpush1.msra.mxu0 0.0
        %1174 = vmatprep.subr.mxu0 0.0
        %1175 = vmatpush1.msra.mxu0 0.0
        %1176 = vmatprep.subr.mxu0 0.0
        %1177 = vmatpush1.msra.mxu0 0.0
        %1178 = vmatprep.subr.mxu0 0.0
        %1179 = vmatpush1.msra.mxu0 0.0
        %1180 = vmatprep.subr.mxu0 0.0
        %1181 = vmatpush1.msra.mxu0 0.0
        %1182 = vmatprep.subr.mxu0 0.0
        %1183 = vmatpush1.msra.mxu0 0.0
        %1184 = vmatprep.subr.mxu0 0.0
        %1185 = vmatpush1.msra.mxu0 0.0
        %1186 = vmatprep.subr.mxu0 0.0
        %1187 = vmatpush1.msra.mxu0 0.0
        %1188 = vmatprep.subr.mxu0 0.0
        %1189 = vmatpush1.msra.mxu0 0.0
        %1190 = vmatprep.subr.mxu0 0.0
        %1191 = vmatpush1.msra.mxu0 0.0
        %1192 = vmatprep.subr.mxu0 0.0
        %1193 = vmatpush1.msra.mxu0 0.0
        %1194 = vmatprep.subr.mxu0 0.0
        %1195 = vmatpush1.msra.mxu0 %v1159
        %1196 = vmatprep.subr.mxu0 0.0
        %1197 = vmatpush1.msra.mxu0 %v1158
        %1198 = vmatprep.subr.mxu0 0.0
        %1199 = vmatpush1.msra.mxu0 %v1157
        %1200 = vmatprep.subr.mxu0 0.0
        %1201 = vmatpush1.msra.mxu0 %v1156
        %1202 = vmatprep.subr.mxu0 0.0
        %1203 = vmatpush2.msra.mxu0 0.0
        %1204 = vmatprep.subr.mxu0 0.0
        %1205 = vmatpush2.msra.mxu0 0.0
        %1206 = vmatprep.subr.mxu0 0.0
        %1207 = vmatpush2.msra.mxu0 0.0
        %1208 = vmatprep.subr.mxu0 0.0
        %1209 = vmatpush2.msra.mxu0 0.0
        %1210 = vmatprep.subr.mxu0 0.0
        %1211 = vmatpush2.msra.mxu0 0.0
        %1212 = vmatprep.subr.mxu0 0.0
        %1213 = vmatpush2.msra.mxu0 0.0
        %1214 = vmatprep.subr.mxu0 0.0
        %1215 = vmatpush2.msra.mxu0 0.0
        %1216 = vmatprep.subr.mxu0 0.0
        %1217 = vmatpush2.msra.mxu0 0.0
        %1218 = vmatprep.subr.mxu0 0.0
        %1219 = vmatpush2.msra.mxu0 0.0
        %1220 = vmatprep.subr.mxu0 0.0
        %1221 = vmatpush2.msra.mxu0 0.0
        %1222 = vmatprep.subr.mxu0 0.0
        %1223 = vmatpush2.msra.mxu0 0.0
        %1224 = vmatprep.subr.mxu0 0.0
        %1225 = vmatpush2.msra.mxu0 0.0
        %1226 = vmatprep.subr.mxu0 0.0
        %1227 = vmatpush2.msra.mxu0 0.0
        %1228 = vmatprep.subr.mxu0 0.0
        %1229 = vmatpush2.msra.mxu0 0.0
        %1230 = vmatprep.subr.mxu0 0.0
        %1231 = vmatpush2.msra.mxu0 0.0
        %1232 = vmatprep.subr.mxu0 0.0
        %1233 = vmatpush2.msra.mxu0 0.0
        %1234 = vmatprep.mubr.f32.mxu0 0.0
        %1235 = vmatmul.mubr.f32.gmra.mxu0 %v1168
        %v1236 = vpop.f32.mrf.mxu0
        %v1237 = vadd.f32 %v1165, %v1236
        %v1238 = vpop.f32.mrf.mxu0
        %1239 = vdwg.mxu0
        %1240 = vst.msk [vmem:[%s297] sm:$0xff] %vm510, %v1237
        %s1241 = sand.u32 %s156, 1
        %s1242 = scalar_lea.sflag [#allocation5], %s1241
        %s1243 = sand.u32 %s156, 1
        %s1244 = smul.addr %s1243, 8
        %s1245 = scalar_lea.vmem [#allocation11], %s1244
        // Predicated region
        $region61: #{tpu_custom_call.1} parent=39 // pred_check
          %p1246 = pneg %p166
        $region62: #{tpu_custom_call.1} parent=39 // pred_check_branch
          %1248 = sbr.rel (%p1246) target = $region64
        $region63: #{tpu_custom_call.1} parent=39 // pred_region
          %s1250 = ssub.s32 128, 128
          %1251 = vsyncadd %s1242, %s1250
          %s1252 = sadd.s32 %s29, %s28
          %s1253 = smul.addr %s1252, 128
          %s1254 = scalar_lea.hbm %s5, %s1253
          %s1256 = sshll.u32 %s1245, 4
          %s1257 = int_to_ptr.vmem [resolvable:$true] %s1256
          %1259 = dma.vmem_to_hbm [thread:$0]  %s1257, 128, %s1254, %s1242
        $region64: #{tpu_custom_call.1} parent=39 // pred_fallthru
          _
      $region40: #{tpu_custom_call.1} parent=5 // pred_fallthru
        _
      %p1260 = scmp.le.s32.totalorder 2, %s19
      // Predicated region
      $region65: #{tpu_custom_call.1} parent=5 // pred_check
        %p1261 = pneg %p1260
      $region66: #{tpu_custom_call.1} parent=5 // pred_check_branch
        %1263 = sbr.rel (%p1261) target = $region68
      $region67: #{tpu_custom_call.1} parent=5 // pred_region
        %s1264 = ssub.s32 %s19, 2
        // Predicated region
        $region69: #{tpu_custom_call.1} parent=67 // pred_check
          %p1265 = pneg %p172
        $region70: #{tpu_custom_call.1} parent=67 // pred_check_branch
          %1267 = sbr.rel (%p1265) target = $region72
        $region71: #{tpu_custom_call.1} parent=67 // pred_region
          %s1268 = sand.u32 %s157, 1
          %s1269 = scalar_lea.sflag [#allocation5], %s1268
          %s1270 = sand.u32 %s157, 1
          %s1271 = smul.addr %s1270, 8
          %s1272 = scalar_lea.vmem [#allocation11], %s1271
          %1273 = dma.done %s1269, 128
        $region72: #{tpu_custom_call.1} parent=67 // pred_fallthru
          _
      $region68: #{tpu_custom_call.1} parent=5 // pred_fallthru
        _
    $region6: #{tpu_custom_call.1} parent=1 // loop_footer
      %s23 = sadd.s32 1, %s19
    $region7: #{tpu_custom_call.1} parent=1 // loop_footer_branch
      %18 = sbr.rel target = $region3
    $region8: #{tpu_custom_call.1} parent=1 // loop_exit
      _
    %1274 = vsyncpa [#allocation4], 1
    %s1275 = scalar_lea.sflag [#allocation4], 1
    %1276 = vsyncpa %s1275, 1
    %1277 = vsyncpa [#allocation7], 1
    %1278 = vsyncpa [#allocation10], 1
    %1279 = vsyncpa [#allocation5], 1
    %s1280 = scalar_lea.sflag [#allocation5], 1
    %1281 = vsyncpa %s1280, 1

// kernel: tpu_custom_call.1
$region0: #{tpu_custom_call.1}
  #allocation0 [shape = 'u32[]', space=smem, size = 0x4, offset = 0x4, fixed_abs, tag = 'smem constant byte address 0x4 - core index']
  #allocation1 [shape = 'u32[144,128]{1,0:T(1,128)}', space=vmem, size = 0x12000, scoped, tag = 'internal scratch']
  #allocation2 [shape = 'f32[2,8,32]{2,1,0:T(8,128)}', space=vmem, size = 0x2000, scoped, tag = 'scratch operand']
  %s0 = inlined_call_operand.hbm [shape: f32[2,8,32], index: 0, kind: input, shape index: {}]
  %s1 = inlined_call_operand.hbm [shape: f32[32,32], index: 1, kind: input, shape index: {}]
  %s2 = inlined_call_operand.hbm [shape: f32[32,64], index: 2, kind: input, shape index: {}]
  %s3 = inlined_call_operand.hbm [shape: f32[32,32], index: 3, kind: input, shape index: {}]
  %s4 = inlined_call_operand.vmem [shape: f32[1,32], index: 4, kind: input, shape index: {}]
  %s5 = inlined_call_operand.hbm [shape: f32[2,8,32], index: 5, kind: output, shape index: {}]
  %s6 = sld [smem:[#allocation0]]
  $region73: #{tpu_custom_call.1} parent=0
    _
  %s8 = ssub.s32 1, %s6
  %s9 = scalar_select 0, %s8, %s6
  $region1: #{tpu_custom_call.1} parent=0
    #allocation3 [shape = 'u8[8192]{0}', space=vmem, size = 0x2000, scoped, tag = 'input window, operand 0']
    #allocation4 [shape = 's32[2]{0}', space=sflag, size = 0x8, scoped, tag = 'scoped memory for tpu_custom_call.1']
    #allocation5 [shape = 's32[2]{0}', space=sflag, size = 0x8, scoped, tag = 'scoped memory for tpu_custom_call.1']
    #allocation6 [shape = 'u8[16384]{0}', space=vmem, size = 0x4000, scoped, tag = 'input window, operand 1, single buffered']
    #allocation7 [shape = 's32[1]{0}', space=sflag, size = 0x4, scoped, tag = 'scoped memory for tpu_custom_call.1']
    #allocation8 [shape = 'u8[16384]{0}', space=vmem, size = 0x4000, scoped, tag = 'input window, operand 2, single buffered']
    #allocation9 [shape = 'u8[16384]{0}', space=vmem, size = 0x4000, scoped, tag = 'input window, operand 3, single buffered']
    #allocation10 [shape = 's32[1]{0}', space=sflag, size = 0x4, scoped, tag = 'scoped memory for tpu_custom_call.1']
    #allocation11 [shape = 'u8[8192]{0}', space=vmem, size = 0x2000, scoped, tag = 'output window, operand 0']
    %10 = vsyncpa [#allocation4], 0
    %s11 = scalar_lea.sflag [#allocation4], 1
    %12 = vsyncpa %s11, 0
    %13 = vsyncpa [#allocation7], 0
    %14 = vsyncpa [#allocation10], 0
    %15 = vsyncpa [#allocation5], 0
    %s16 = scalar_lea.sflag [#allocation5], 1
    %17 = vsyncpa %s16, 0
    loop: start=0, step=1, limit=4
    $region2: #{tpu_custom_call.1} parent=1 // loop_pre_header
      _
    $region3: #{tpu_custom_call.1} parent=1 // loop_header
      %s19 = sphi 0, %s23
      %p20 = scmp.ge.s32.totalorder %s19, 4
      %s26 = sphi 0, %s38
      %s27 = sphi 0, %s34
      %s28 = sphi 0, %s26
      %s29 = sphi 0, %s27
      %s30 = sphi 0, %s28
      %s31 = sphi 0, %s29
      %s41 = sphi 0, %s43
      %s44 = sphi 0, %s41
      %s45 = sphi 0, %s44
      %s61 = sphi 0, %s45
      %s65 = sphi 0, %s65
      %s67 = sphi 0, %s65
      %s68 = sphi 0, %s67
      %s82 = sphi 0, %s68
      %s86 = sphi 0, %s86
      %s88 = sphi 0, %s86
      %s89 = sphi 0, %s88
      %s103 = sphi 0, %s89
      %s107 = sphi 0, %s107
      %s109 = sphi 0, %s107
      %s110 = sphi 0, %s109
      %s124 = sphi 0, %s110
      %s128 = sphi 0, %s128
      %s130 = sphi 0, %s128
      %s131 = sphi 0, %s130
      %s145 = sphi 0, %s131
      %s153 = sphi 0, %s155
      %s156 = sphi 0, %s153
      %s157 = sphi 0, %s156
      %s173 = sphi 0, %s157
    $region4: #{tpu_custom_call.1} parent=1 // loop_header_branch
      %22 = sbr.rel (%p20) target = $region8
    $region5: #{tpu_custom_call.1} parent=1 // loop_body
      %s24 = ssub.s32 %s19, 1
      %s25 = ssub.s32 %s19, 2
      %s32 = sadd.s32 1, %s27
      %p33 = scmp.ge.s32.totalorder %s32, 1
      %s34 = scalar_select %p33, 0, %s32
      %s35 = sadd.s32 1, %s26
      %s36 = scalar_select %p33, %s35, %s26
      %p37 = scmp.ge.s32.totalorder %s36, 2
      %s38 = scalar_select %p37, 0, %s36
      %s39 = ssub.s32 %s26, %s38
      %p40 = scmp.eq.s32.totalorder %s39, 0
      %s42 = sadd.s32 %s41, 1
      %s43 = scalar_select %p40, %s41, %s42
      %p46 = pneg %p40
      %p47 = scmp.eq.s32.totalorder %s19, 1
      %p48 = por %p46, %p47
      %p49 = scmp.ne.s32.totalorder %s41, %s44
      %p50 = scmp.eq.s32.totalorder %s19, 0
      %p51 = por %p49, %p50
      %p52 = scmp.ne.s32.totalorder %s41, %s44
      %p53 = scmp.eq.s32.totalorder %s24, 1
      %p54 = por %p52, %p53
      %p55 = scmp.ne.s32.totalorder %s44, %s45
      %p56 = scmp.eq.s32.totalorder %s24, 0
      %p57 = por %p55, %p56
      %p58 = scmp.ne.s32.totalorder %s44, %s45
      %p59 = scmp.eq.s32.totalorder %s25, 1
      %p60 = por %p58, %p59
      %p62 = scmp.ne.s32.totalorder %s45, %s61
      %p63 = scmp.eq.s32.totalorder %s25, 0
      %p64 = por %p62, %p63
      %s66 = sadd.s32 %s65, 1
      %p69 = scmp.eq.s32.totalorder %s19, 1
      %p70 = scmp.ne.s32.totalorder %s65, %s67
      %p71 = scmp.eq.s32.totalorder %s19, 0
      %p72 = por %p70, %p71
      %p73 = scmp.ne.s32.totalorder %s65, %s67
      %p74 = scmp.eq.s32.totalorder %s24, 1
      %p75 = por %p73, %p74
      %p76 = scmp.ne.s32.totalorder %s67, %s68
      %p77 = scmp.eq.s32.totalorder %s24, 0
      %p78 = por %p76, %p77
      %p79 = scmp.ne.s32.totalorder %s67, %s68
      %p80 = scmp.eq.s32.totalorder %s25, 1
      %p81 = por %p79, %p80
      %p83 = scmp.ne.s32.totalorder %s68, %s82
      %p84 = scmp.eq.s32.totalorder %s25, 0
      %p85 = por %p83, %p84
      %s87 = sadd.s32 %s86, 1
      %p90 = scmp.eq.s32.totalorder %s19, 1
      %p91 = scmp.ne.s32.totalorder %s86, %s88
      %p92 = scmp.eq.s32.totalorder %s19, 0
      %p93 = por %p91, %p92
      %p94 = scmp.ne.s32.totalorder %s86, %s88
      %p95 = scmp.eq.s32.totalorder %s24, 1
      %p96 = por %p94, %p95
      %p97 = scmp.ne.s32.totalorder %s88, %s89
      %p98 = scmp.eq.s32.totalorder %s24, 0
      %p99 = por %p97, %p98
      %p100 = scmp.ne.s32.totalorder %s88, %s89
      %p101 = scmp.eq.s32.totalorder %s25, 1
      %p102 = por %p100, %p101
      %p104 = scmp.ne.s32.totalorder %s89, %s103
      %p105 = scmp.eq.s32.totalorder %s25, 0
      %p106 = por %p104, %p105
      %s108 = sadd.s32 %s107, 1
      %p111 = scmp.eq.s32.totalorder %s19, 1
      %p112 = scmp.ne.s32.totalorder %s107, %s109
      %p113 = scmp.eq.s32.totalorder %s19, 0
      %p114 = por %p112, %p113
      %p115 = scmp.ne.s32.totalorder %s107, %s109
      %p116 = scmp.eq.s32.totalorder %s24, 1
      %p117 = por %p115, %p116
      %p118 = scmp.ne.s32.totalorder %s109, %s110
      %p119 = scmp.eq.s32.totalorder %s24, 0
      %p120 = por %p118, %p119
      %p121 = scmp.ne.s32.totalorder %s109, %s110
      %p122 = scmp.eq.s32.totalorder %s25, 1
      %p123 = por %p121, %p122
      %p125 = scmp.ne.s32.totalorder %s110, %s124
      %p126 = scmp.eq.s32.totalorder %s25, 0
      %p127 = por %p125, %p126
      %s129 = sadd.s32 %s128, 1
      %p132 = scmp.eq.s32.totalorder %s19, 1
      %p133 = scmp.ne.s32.totalorder %s128, %s130
      %p134 = scmp.eq.s32.totalorder %s19, 0
      %p135 = por %p133, %p134
      %p136 = scmp.ne.s32.totalorder %s128, %s130
      %p137 = scmp.eq.s32.totalorder %s24, 1
      %p138 = por %p136, %p137
      %p139 = scmp.ne.s32.totalorder %s130, %s131
      %p140 = scmp.eq.s32.totalorder %s24, 0
      %p141 = por %p139, %p140
      %p142 = scmp.ne.s32.totalorder %s130, %s131
      %p143 = scmp.eq.s32.totalorder %s25, 1
      %p144 = por %p142, %p143
      %p146 = scmp.ne.s32.totalorder %s131, %s145
      %p147 = scmp.eq.s32.totalorder %s25, 0
      %p148 = por %p146, %p147
      %s149 = ssub.s32 %s26, %s38
      %s150 = ssub.s32 %s27, %s34
      %s151 = sor.u32 %s149, %s150
      %p152 = scmp.eq.s32.totalorder %s151, 0
      %s154 = sadd.s32 %s153, 1
      %s155 = scalar_select %p152, %s153, %s154
      %p158 = pneg %p152
      %p159 = scmp.eq.s32.totalorder %s19, 1
      %p160 = por %p158, %p159
      %p161 = scmp.ne.s32.totalorder %s153, %s156
      %p162 = scmp.eq.s32.totalorder %s19, 0
      %p163 = por %p161, %p162
      %p164 = scmp.ne.s32.totalorder %s153, %s156
      %p165 = scmp.eq.s32.totalorder %s24, 1
      %p166 = por %p164, %p165
      %p167 = scmp.ne.s32.totalorder %s156, %s157
      %p168 = scmp.eq.s32.totalorder %s24, 0
      %p169 = por %p167, %p168
      %p170 = scmp.ne.s32.totalorder %s156, %s157
      %p171 = scmp.eq.s32.totalorder %s25, 1
      %p172 = por %p170, %p171
      %p174 = scmp.ne.s32.totalorder %s157, %s173
      %p175 = scmp.eq.s32.totalorder %s25, 0
      %p176 = por %p174, %p175
      %p177 = scmp.le.s32.totalorder 1, %s19
      %p178 = scmp.lt.s32.totalorder %s19, 3
      %p179 = pnand %p177, %p178
      %p180 = pneg %p179
      // Predicated region
      $region9: #{tpu_custom_call.1} parent=5 // pred_check
        _
      $region10: #{tpu_custom_call.1} parent=5 // pred_check_branch
        %182 = sbr.rel (%p179) target = $region12
      $region11: #{tpu_custom_call.1} parent=5 // pred_region
        %s183 = ssub.s32 %s19, 1
        // Predicated region
        $region13: #{tpu_custom_call.1} parent=11 // pred_check
          %p184 = pneg %p78
        $region14: #{tpu_custom_call.1} parent=11 // pred_check_branch
          %186 = sbr.rel (%p184) target = $region16
        $region15: #{tpu_custom_call.1} parent=11 // pred_region
          %s188 = ssub.s32 512, 512
          %189 = vsyncadd [#allocation7], %s188
          %s190 = sshll.u32 [#allocation6], 4
          %s191 = int_to_ptr.vmem [resolvable:$true] %s190
          %196 = dma.hbm_to_vmem [thread:$0]  %s1, 512, %s191, [#allocation7], 128, 128, 8
        $region16: #{tpu_custom_call.1} parent=11 // pred_fallthru
          _
        // Predicated region
        $region17: #{tpu_custom_call.1} parent=11 // pred_check
          %p197 = pneg %p99
        $region18: #{tpu_custom_call.1} parent=11 // pred_check_branch
          %199 = sbr.rel (%p197) target = $region20
        $region19: #{tpu_custom_call.1} parent=11 // pred_region
          %s201 = ssub.s32 512, 512
          %202 = vsyncadd [#allocation7], %s201
          %s203 = sshll.u32 [#allocation8], 4
          %s204 = int_to_ptr.vmem [resolvable:$true] %s203
          %209 = dma.hbm_to_vmem [thread:$0]  %s2, 512, %s204, [#allocation7], 128, 128, 8
        $region20: #{tpu_custom_call.1} parent=11 // pred_fallthru
          _
        // Predicated region
        $region21: #{tpu_custom_call.1} parent=11 // pred_check
          %p210 = pneg %p120
        $region22: #{tpu_custom_call.1} parent=11 // pred_check_branch
          %212 = sbr.rel (%p210) target = $region24
        $region23: #{tpu_custom_call.1} parent=11 // pred_region
          %s214 = ssub.s32 512, 512
          %215 = vsyncadd [#allocation10], %s214
          %s216 = sshll.u32 [#allocation9], 4
          %s217 = int_to_ptr.vmem [resolvable:$true] %s216
          %222 = dma.hbm_to_vmem [thread:$0]  %s3, 512, %s217, [#allocation10], 128, 128, 8
        $region24: #{tpu_custom_call.1} parent=11 // pred_fallthru
          _
        // Predicated region
        $region25: #{tpu_custom_call.1} parent=11 // pred_check
          %p223 = pneg %p141
        $region26: #{tpu_custom_call.1} parent=11 // pred_check_branch
          %225 = sbr.rel (%p223) target = $region28
        $region27: #{tpu_custom_call.1} parent=11 // pred_region
          _
        $region28: #{tpu_custom_call.1} parent=11 // pred_fallthru
          _
      $region12: #{tpu_custom_call.1} parent=5 // pred_fallthru
        _
      %p226 = scmp.lt.s32.totalorder %s19, 2
      // Predicated region
      $region29: #{tpu_custom_call.1} parent=5 // pred_check
        %p227 = pneg %p226
      $region30: #{tpu_custom_call.1} parent=5 // pred_check_branch
        %229 = sbr.rel (%p227) target = $region32
      $region31: #{tpu_custom_call.1} parent=5 // pred_region
        // Predicated region
        $region33: #{tpu_custom_call.1} parent=31 // pred_check
          %p230 = pneg %p51
        $region34: #{tpu_custom_call.1} parent=31 // pred_check_branch
          %232 = sbr.rel (%p230) target = $region36
        $region35: #{tpu_custom_call.1} parent=31 // pred_region
          %s233 = sand.u32 %s41, 1
          %s234 = scalar_lea.sflag [#allocation4], %s233
          %s235 = sand.u32 %s41, 1
          %s236 = smul.addr %s235, 8
          %s237 = scalar_lea.vmem [#allocation3], %s236
          %s239 = ssub.s32 128, 128
          %240 = vsyncadd %s234, %s239
          %s241 = smul.addr %s26, 128
          %s242 = scalar_lea.hbm %s0, %s241
          %s244 = sshll.u32 %s237, 4
          %s245 = int_to_ptr.vmem [resolvable:$true] %s244
          %247 = dma.hbm_to_vmem [thread:$0]  %s242, 128, %s245, %s234
        $region36: #{tpu_custom_call.1} parent=31 // pred_fallthru
          _
      $region32: #{tpu_custom_call.1} parent=5 // pred_fallthru
        _
      %p248 = scmp.le.s32.totalorder 1, %s19
      %p249 = scmp.lt.s32.totalorder %s19, 3
      %p250 = pnand %p248, %p249
      %p251 = pneg %p250
      // Predicated region
      $region37: #{tpu_custom_call.1} parent=5 // pred_check
        _
      $region38: #{tpu_custom_call.1} parent=5 // pred_check_branch
        %253 = sbr.rel (%p250) target = $region40
      $region39: #{tpu_custom_call.1} parent=5 // pred_region
        %s254 = ssub.s32 %s19, 1
        %s255 = sand.u32 %s44, 1
        %s256 = scalar_lea.sflag [#allocation4], %s255
        %s257 = sand.u32 %s44, 1
        %s258 = smul.addr %s257, 8
        %s259 = scalar_lea.vmem [#allocation3], %s258
        // Predicated region
        $region41: #{tpu_custom_call.1} parent=39 // pred_check
          %p260 = pneg %p57
        $region42: #{tpu_custom_call.1} parent=39 // pred_check_branch
          %262 = sbr.rel (%p260) target = $region44
        $region43: #{tpu_custom_call.1} parent=39 // pred_region
          %263 = dma.done %s256, 128
        $region44: #{tpu_custom_call.1} parent=39 // pred_fallthru
          _
        // Predicated region
        $region45: #{tpu_custom_call.1} parent=39 // pred_check
          %p264 = pneg %p78
        $region46: #{tpu_custom_call.1} parent=39 // pred_check_branch
          %266 = sbr.rel (%p264) target = $region48
        $region47: #{tpu_custom_call.1} parent=39 // pred_region
          %267 = dma.done [#allocation7], 512
        $region48: #{tpu_custom_call.1} parent=39 // pred_fallthru
          _
        // Predicated region
        $region49: #{tpu_custom_call.1} parent=39 // pred_check
          %p268 = pneg %p99
        $region50: #{tpu_custom_call.1} parent=39 // pred_check_branch
          %270 = sbr.rel (%p268) target = $region52
        $region51: #{tpu_custom_call.1} parent=39 // pred_region
          %271 = dma.done [#allocation7], 512
        $region52: #{tpu_custom_call.1} parent=39 // pred_fallthru
          _
        // Predicated region
        $region53: #{tpu_custom_call.1} parent=39 // pred_check
          %p272 = pneg %p120
        $region54: #{tpu_custom_call.1} parent=39 // pred_check_branch
          %274 = sbr.rel (%p272) target = $region56
        $region55: #{tpu_custom_call.1} parent=39 // pred_region
          %275 = dma.done [#allocation10], 512
        $region56: #{tpu_custom_call.1} parent=39 // pred_fallthru
          _
        %s276 = sand.u32 %s44, 1
        %s277 = scalar_lea.sflag [#allocation4], %s276
        %s278 = sand.u32 %s44, 1
        %s279 = smul.addr %s278, 8
        %s280 = scalar_lea.vmem [#allocation3], %s279
        %p281 = pneg %p57
        %p282 = pneg %p54
        %p283 = pneg %p78
        %p284 = pneg %p75
        %p285 = pneg %p99
        %p286 = pneg %p96
        %p287 = pneg %p120
        %p288 = pneg %p117
        %p289 = pneg %p141
        %p290 = pneg %p138
        %p291 = pneg %p169
        %p292 = pneg %p166
        %s293 = sand.u32 %s156, 1
        %s294 = scalar_lea.sflag [#allocation5], %s293
        %s295 = sand.u32 %s156, 1
        %s296 = smul.addr %s295, 8
        %s297 = scalar_lea.vmem [#allocation11], %s296
        %p298 = scmp.eq.s32.totalorder %s29, 0
        // Predicated region
        $region57: #{tpu_custom_call.1} parent=39 // pred_check
          %p299 = pneg %p298
        $region58: #{tpu_custom_call.1} parent=39 // pred_check_branch
          %301 = sbr.rel (%p299) target = $region60
        $region59: #{tpu_custom_call.1} parent=39 // pred_region
          %v302 = vld [vmem:[%s259] sm:$0xff]
          %v303 = vld [vmem:[#allocation8] sm:$0xff]
          %v304 = vld [vmem:[#allocation8 + $0x8] sm:$0xff]
          %v305 = vld [vmem:[#allocation8 + $0x10] sm:$0xff]
          %v306 = vld [vmem:[#allocation8 + $0x18] sm:$0xff]
          %vm307 = vcmask 261120
          %v309 = vsel %vm307, %v302, 0
          %311 = vmatprep.subr.mxu0 0.0
          %312 = vmatpush1.msra.mxu0 0.0
          %313 = vmatprep.subr.mxu0 0.0
          %314 = vmatpush1.msra.mxu0 0.0
          %315 = vmatprep.subr.mxu0 0.0
          %316 = vmatpush1.msra.mxu0 0.0
          %317 = vmatprep.subr.mxu0 0.0
          %318 = vmatpush1.msra.mxu0 0.0
          %319 = vmatprep.subr.mxu0 0.0
          %320 = vmatpush1.msra.mxu0 0.0
          %321 = vmatprep.subr.mxu0 0.0
          %322 = vmatpush1.msra.mxu0 0.0
          %323 = vmatprep.subr.mxu0 0.0
          %324 = vmatpush1.msra.mxu0 0.0
          %325 = vmatprep.subr.mxu0 0.0
          %326 = vmatpush1.msra.mxu0 0.0
          %327 = vmatprep.subr.mxu0 0.0
          %328 = vmatpush1.msra.mxu0 0.0
          %329 = vmatprep.subr.mxu0 0.0
          %330 = vmatpush1.msra.mxu0 0.0
          %331 = vmatprep.subr.mxu0 0.0
          %332 = vmatpush1.msra.mxu0 0.0
          %333 = vmatprep.subr.mxu0 0.0
          %334 = vmatpush1.msra.mxu0 0.0
          %335 = vmatprep.subr.mxu0 0.0
          %336 = vmatpush1.msra.mxu0 %v306
          %337 = vmatprep.subr.mxu0 0.0
          %338 = vmatpush1.msra.mxu0 %v305
          %339 = vmatprep.subr.mxu0 0.0
          %340 = vmatpush1.msra.mxu0 %v304
          %341 = vmatprep.subr.mxu0 0.0
          %342 = vmatpush1.msra.mxu0 %v303
          %343 = vmatprep.subr.mxu0 0.0
          %344 = vmatpush2.msra.mxu0 0.0
          %345 = vmatprep.subr.mxu0 0.0
          %346 = vmatpush2.msra.mxu0 0.0
          %347 = vmatprep.subr.mxu0 0.0
          %348 = vmatpush2.msra.mxu0 0.0
          %349 = vmatprep.subr.mxu0 0.0
          %350 = vmatpush2.msra.mxu0 0.0
          %351 = vmatprep.subr.mxu0 0.0
          %352 = vmatpush2.msra.mxu0 0.0
          %353 = vmatprep.subr.mxu0 0.0
          %354 = vmatpush2.msra.mxu0 0.0
          %355 = vmatprep.subr.mxu0 0.0
          %356 = vmatpush2.msra.mxu0 0.0
          %357 = vmatprep.subr.mxu0 0.0
          %358 = vmatpush2.msra.mxu0 0.0
          %359 = vmatprep.subr.mxu0 0.0
          %360 = vmatpush2.msra.mxu0 0.0
          %361 = vmatprep.subr.mxu0 0.0
          %362 = vmatpush2.msra.mxu0 0.0
          %363 = vmatprep.subr.mxu0 0.0
          %364 = vmatpush2.msra.mxu0 0.0
          %365 = vmatprep.subr.mxu0 0.0
          %366 = vmatpush2.msra.mxu0 0.0
          %367 = vmatprep.subr.mxu0 0.0
          %368 = vmatpush2.msra.mxu0 0.0
          %369 = vmatprep.subr.mxu0 0.0
          %370 = vmatpush2.msra.mxu0 0.0
          %371 = vmatprep.subr.mxu0 0.0
          %372 = vmatpush2.msra.mxu0 0.0
          %373 = vmatprep.subr.mxu0 0.0
          %374 = vmatpush2.msra.mxu0 0.0
          %375 = vmatprep.mubr.f32.mxu0 0.0
          %376 = vmatmul.mubr.f32.gmra.mxu0 %v309
          %v377 = vpop.f32.mrf.mxu0
          %v378 = vadd.f32 0.0, %v377
          %v379 = vpop.f32.mrf.mxu0
          %380 = vdwg.mxu0
          %382 = vrot.lane.b32.xlu0 %v378, 96
          %v383 = vpop.permute.xlu0 %382
          %v385 = vcombine.high %v378, 0.0
          %v387 = vunpack.c.l.s4 1983009808
          %v388 = vunpack.c.0.s8 %v387
          %v389 = vlaneseq
          %v390 = vshrl.u32 %v389, 7
          %v391 = vsub.s32 %v388, %v390
          %v392 = vrot.slane %v378, %v391
          %v394 = vunpack.c.l.s4 1983009808
          %v395 = vunpack.c.0.s8 %v394
          %v396 = vlaneseq
          %v397 = vshrl.u32 %v396, 7
          %v398 = vsub.s32 %v395, %v397
          %v399 = vrot.slane %v385, %v398
          %v400 = vcombine.high %v383, 0.0
          %v402 = vunpack.c.l.s4 1983009808
          %v403 = vunpack.c.0.s8 %v402
          %v404 = vlaneseq
          %v405 = vshrl.u32 %v404, 7
          %v406 = vsub.s32 %v403, %v405
          %v407 = vrot.slane %v383, %v406
          %v409 = vunpack.c.l.s4 1983009808
          %v410 = vunpack.c.0.s8 %v409
          %v411 = vlaneseq
          %v412 = vshrl.u32 %v411, 7
          %v413 = vsub.s32 %v410, %v412
          %v414 = vrot.slane %v400, %v413
          %v415 = vcombine.low %v392, %v407
          %v416 = vcombine.high %v392, %v407
          %v418 = vunpack.c.l.s4 1934713408
          %v419 = vunpack.c.0.s8 %v418
          %v420 = vlaneseq
          %v421 = vshrl.u32 %v420, 7
          %v422 = vsub.s32 %v419, %v421
          %v423 = vrot.slane %v415, %v422
          %v425 = vunpack.c.l.s4 1934713408
          %v426 = vunpack.c.0.s8 %v425
          %v427 = vlaneseq
          %v428 = vshrl.u32 %v427, 7
          %v429 = vsub.s32 %v426, %v428
          %v430 = vrot.slane %v416, %v429
          %v431 = vcombine.low %v399, %v414
          %v432 = vcombine.high %v399, %v414
          %v434 = vunpack.c.l.s4 1934713408
          %v435 = vunpack.c.0.s8 %v434
          %v436 = vlaneseq
          %v437 = vshrl.u32 %v436, 7
          %v438 = vsub.s32 %v435, %v437
          %v439 = vrot.slane %v431, %v438
          %v441 = vunpack.c.l.s4 1934713408
          %v442 = vunpack.c.0.s8 %v441
          %v443 = vlaneseq
          %v444 = vshrl.u32 %v443, 7
          %v445 = vsub.s32 %v442, %v444
          %v446 = vrot.slane %v432, %v445
          %v447 = vcombine.high %v423, 0.0
          %v448 = vcombine.high %v430, 0.0
          %v449 = vcombine.high %v439, 0.0
          %v450 = vcombine.high %v446, 0.0
          %v451 = vcombine.low %v423, %v430
          %v453 = vunpack.c.l.s4 1983009808
          %v454 = vunpack.c.0.s8 %v453
          %v455 = vlaneseq
          %v456 = vshrl.u32 %v455, 7
          %v457 = vsub.s32 %v454, %v456
          %v458 = vrot.slane %v451, %v457
          %v459 = vcombine.low %v447, %v448
          %v461 = vunpack.c.l.s4 1983009808
          %v462 = vunpack.c.0.s8 %v461
          %v463 = vlaneseq
          %v464 = vshrl.u32 %v463, 7
          %v465 = vsub.s32 %v462, %v464
          %v466 = vrot.slane %v459, %v465
          %v467 = vcombine.low %v439, %v446
          %v469 = vunpack.c.l.s4 1983009808
          %v470 = vunpack.c.0.s8 %v469
          %v471 = vlaneseq
          %v472 = vshrl.u32 %v471, 7
          %v473 = vsub.s32 %v470, %v472
          %v474 = vrot.slane %v467, %v473
          %v475 = vcombine.low %v449, %v450
          %v477 = vunpack.c.l.s4 1983009808
          %v478 = vunpack.c.0.s8 %v477
          %v479 = vlaneseq
          %v480 = vshrl.u32 %v479, 7
          %v481 = vsub.s32 %v478, %v480
          %v482 = vrot.slane %v475, %v481
          %v483 = vcombine.low %v458, %v466
          %v485 = vunpack.c.l.s4 1934713408
          %v486 = vunpack.c.0.s8 %v485
          %v487 = vlaneseq
          %v488 = vshrl.u32 %v487, 7
          %v489 = vsub.s32 %v486, %v488
          %v490 = vrot.slane %v483, %v489
          %v491 = vcombine.low %v474, %v482
          %v493 = vunpack.c.l.s4 1934713408
          %v494 = vunpack.c.0.s8 %v493
          %v495 = vlaneseq
          %v496 = vshrl.u32 %v495, 7
          %v497 = vsub.s32 %v494, %v496
          %v498 = vrot.slane %v491, %v497
          %v499 = vcombine.low %v490, %v498
          %v500 = vcombine.high %v490, %v498
          %501 = vst.msk [vmem:[#allocation2] sm:$0xff] %vm307, %v499
          %502 = vst.msk [vmem:[#allocation2 + $0x8] sm:$0xff] %vm307, %v500
        $region60: #{tpu_custom_call.1} parent=39 // pred_fallthru
          _
        %s503 = smul.u32 %s29, 8
        %s504 = scalar_lea.vmem %s259, %s503 [#allocation3]
        %v505 = vld [vmem:[%s504] sm:$0xff]
        %v506 = vld [vmem:[#allocation6] sm:$0xff]
        %v507 = vld [vmem:[#allocation6 + $0x8] sm:$0xff]
        %v508 = vld [vmem:[#allocation6 + $0x10] sm:$0xff]
        %v509 = vld [vmem:[#allocation6 + $0x18] sm:$0xff]
        %vm510 = vcmask 261120
        %v512 = vsel %vm510, %v505, 0
        %514 = vmatprep.subr.mxu0 0.0
        %515 = vmatpush1.msra.mxu0 0.0
        %516 = vmatprep.subr.mxu0 0.0
        %517 = vmatpush1.msra.mxu0 0.0
        %518 = vmatprep.subr.mxu0 0.0
        %519 = vmatpush1.msra.mxu0 0.0
        %520 = vmatprep.subr.mxu0 0.0
        %521 = vmatpush1.msra.mxu0 0.0
        %522 = vmatprep.subr.mxu0 0.0
        %523 = vmatpush1.msra.mxu0 0.0
        %524 = vmatprep.subr.mxu0 0.0
        %525 = vmatpush1.msra.mxu0 0.0
        %526 = vmatprep.subr.mxu0 0.0
        %527 = vmatpush1.msra.mxu0 0.0
        %528 = vmatprep.subr.mxu0 0.0
        %529 = vmatpush1.msra.mxu0 0.0
        %530 = vmatprep.subr.mxu0 0.0
        %531 = vmatpush1.msra.mxu0 0.0
        %532 = vmatprep.subr.mxu0 0.0
        %533 = vmatpush1.msra.mxu0 0.0
        %534 = vmatprep.subr.mxu0 0.0
        %535 = vmatpush1.msra.mxu0 0.0
        %536 = vmatprep.subr.mxu0 0.0
        %537 = vmatpush1.msra.mxu0 0.0
        %538 = vmatprep.subr.mxu0 0.0
        %539 = vmatpush1.msra.mxu0 %v509
        %540 = vmatprep.subr.mxu0 0.0
        %541 = vmatpush1.msra.mxu0 %v508
        %542 = vmatprep.subr.mxu0 0.0
        %543 = vmatpush1.msra.mxu0 %v507
        %544 = vmatprep.subr.mxu0 0.0
        %545 = vmatpush1.msra.mxu0 %v506
        %546 = vmatprep.subr.mxu0 0.0
        %547 = vmatpush2.msra.mxu0 0.0
        %548 = vmatprep.subr.mxu0 0.0
        %549 = vmatpush2.msra.mxu0 0.0
        %550 = vmatprep.subr.mxu0 0.0
        %551 = vmatpush2.msra.mxu0 0.0
        %552 = vmatprep.subr.mxu0 0.0
        %553 = vmatpush2.msra.mxu0 0.0
        %554 = vmatprep.subr.mxu0 0.0
        %555 = vmatpush2.msra.mxu0 0.0
        %556 = vmatprep.subr.mxu0 0.0
        %557 = vmatpush2.msra.mxu0 0.0
        %558 = vmatprep.subr.mxu0 0.0
        %559 = vmatpush2.msra.mxu0 0.0
        %560 = vmatprep.subr.mxu0 0.0
        %561 = vmatpush2.msra.mxu0 0.0
        %562 = vmatprep.subr.mxu0 0.0
        %563 = vmatpush2.msra.mxu0 0.0
        %564 = vmatprep.subr.mxu0 0.0
        %565 = vmatpush2.msra.mxu0 0.0
        %566 = vmatprep.subr.mxu0 0.0
        %567 = vmatpush2.msra.mxu0 0.0
        %568 = vmatprep.subr.mxu0 0.0
        %569 = vmatpush2.msra.mxu0 0.0
        %570 = vmatprep.subr.mxu0 0.0
        %571 = vmatpush2.msra.mxu0 0.0
        %572 = vmatprep.subr.mxu0 0.0
        %573 = vmatpush2.msra.mxu0 0.0
        %574 = vmatprep.subr.mxu0 0.0
        %575 = vmatpush2.msra.mxu0 0.0
        %576 = vmatprep.subr.mxu0 0.0
        %577 = vmatpush2.msra.mxu0 0.0
        %578 = vmatprep.mubr.f32.mxu0 0.0
        %579 = vmatmul.mubr.f32.gmra.mxu0 %v512
        %v580 = vpop.f32.mrf.mxu0
        %v581 = vadd.f32 0.0, %v580
        %v582 = vpop.f32.mrf.mxu0
        %583 = vdwg.mxu0
        %v584 = vmul.f32 %v581, 0.25
        %586 = vrot.lane.b32.xlu0 %v584, 112
        %v587 = vpop.permute.xlu0 %586
        %v589 = vcombine.high %v584, 0.0
        %v591 = vunpack.c.l.s4 1983009808
        %v592 = vunpack.c.0.s8 %v591
        %v593 = vlaneseq
        %v594 = vshrl.u32 %v593, 7
        %v595 = vsub.s32 %v592, %v594
        %v596 = vrot.slane %v584, %v595
        %v598 = vunpack.c.l.s4 1983009808
        %v599 = vunpack.c.0.s8 %v598
        %v600 = vlaneseq
        %v601 = vshrl.u32 %v600, 7
        %v602 = vsub.s32 %v599, %v601
        %v603 = vrot.slane %v589, %v602
        %v604 = vcombine.high %v587, 0.0
        %v606 = vunpack.c.l.s4 1983009808
        %v607 = vunpack.c.0.s8 %v606
        %v608 = vlaneseq
        %v609 = vshrl.u32 %v608, 7
        %v610 = vsub.s32 %v607, %v609
        %v611 = vrot.slane %v587, %v610
        %v613 = vunpack.c.l.s4 1983009808
        %v614 = vunpack.c.0.s8 %v613
        %v615 = vlaneseq
        %v616 = vshrl.u32 %v615, 7
        %v617 = vsub.s32 %v614, %v616
        %v618 = vrot.slane %v604, %v617
        %v619 = vcombine.low %v596, %v611
        %v620 = vcombine.high %v596, %v611
        %v622 = vunpack.c.l.s4 1934713408
        %v623 = vunpack.c.0.s8 %v622
        %v624 = vlaneseq
        %v625 = vshrl.u32 %v624, 7
        %v626 = vsub.s32 %v623, %v625
        %v627 = vrot.slane %v619, %v626
        %v629 = vunpack.c.l.s4 1934713408
        %v630 = vunpack.c.0.s8 %v629
        %v631 = vlaneseq
        %v632 = vshrl.u32 %v631, 7
        %v633 = vsub.s32 %v630, %v632
        %v634 = vrot.slane %v620, %v633
        %v635 = vcombine.low %v603, %v618
        %v636 = vcombine.high %v603, %v618
        %v638 = vunpack.c.l.s4 1934713408
        %v639 = vunpack.c.0.s8 %v638
        %v640 = vlaneseq
        %v641 = vshrl.u32 %v640, 7
        %v642 = vsub.s32 %v639, %v641
        %v643 = vrot.slane %v635, %v642
        %v645 = vunpack.c.l.s4 1934713408
        %v646 = vunpack.c.0.s8 %v645
        %v647 = vlaneseq
        %v648 = vshrl.u32 %v647, 7
        %v649 = vsub.s32 %v646, %v648
        %v650 = vrot.slane %v636, %v649
        %v651 = vcombine.high %v627, 0.0
        %v652 = vcombine.high %v634, 0.0
        %v653 = vcombine.high %v643, 0.0
        %v654 = vcombine.high %v650, 0.0
        %v655 = vcombine.low %v627, %v634
        %v657 = vunpack.c.l.s4 1983009808
        %v658 = vunpack.c.0.s8 %v657
        %v659 = vlaneseq
        %v660 = vshrl.u32 %v659, 7
        %v661 = vsub.s32 %v658, %v660
        %v662 = vrot.slane %v655, %v661
        %v663 = vcombine.low %v651, %v652
        %v665 = vunpack.c.l.s4 1983009808
        %v666 = vunpack.c.0.s8 %v665
        %v667 = vlaneseq
        %v668 = vshrl.u32 %v667, 7
        %v669 = vsub.s32 %v666, %v668
        %v670 = vrot.slane %v663, %v669
        %v671 = vcombine.low %v643, %v650
        %v673 = vunpack.c.l.s4 1983009808
        %v674 = vunpack.c.0.s8 %v673
        %v675 = vlaneseq
        %v676 = vshrl.u32 %v675, 7
        %v677 = vsub.s32 %v674, %v676
        %v678 = vrot.slane %v671, %v677
        %v679 = vcombine.low %v653, %v654
        %v681 = vunpack.c.l.s4 1983009808
        %v682 = vunpack.c.0.s8 %v681
        %v683 = vlaneseq
        %v684 = vshrl.u32 %v683, 7
        %v685 = vsub.s32 %v682, %v684
        %v686 = vrot.slane %v679, %v685
        %v687 = vcombine.low %v662, %v670
        %v689 = vunpack.c.l.s4 1934713408
        %v690 = vunpack.c.0.s8 %v689
        %v691 = vlaneseq
        %v692 = vshrl.u32 %v691, 7
        %v693 = vsub.s32 %v690, %v692
        %v694 = vrot.slane %v687, %v693
        %v695 = vcombine.low %v678, %v686
        %v697 = vunpack.c.l.s4 1934713408
        %v698 = vunpack.c.0.s8 %v697
        %v699 = vlaneseq
        %v700 = vshrl.u32 %v699, 7
        %v701 = vsub.s32 %v698, %v700
        %v702 = vrot.slane %v695, %v701
        %v703 = vcombine.low %v694, %v702
        %v704 = vcombine.high %v694, %v702
        %v705 = vld [vmem:[#allocation2] sm:$0xff]
        %v706 = vld [vmem:[#allocation2 + $0x8] sm:$0xff]
        %vm707 = vcmask 130048
        %v709 = vsel %vm707, %v703, 0
        %v712 = vsel %vm707, %v705, 0
        %714 = vmatprep.subr.mxu0 0.0
        %715 = vmatpush1.xpose.msra.mxu0 0.0
        %716 = vmatprep.subr.mxu0 0.0
        %717 = vmatpush1.xpose.msra.mxu0 0.0
        %718 = vmatprep.subr.mxu0 0.0
        %719 = vmatpush1.xpose.msra.mxu0 0.0
        %720 = vmatprep.subr.mxu0 0.0
        %721 = vmatpush1.xpose.msra.mxu0 0.0
        %722 = vmatprep.subr.mxu0 0.0
        %723 = vmatpush1.xpose.msra.mxu0 0.0
        %724 = vmatprep.subr.mxu0 0.0
        %725 = vmatpush1.xpose.msra.mxu0 0.0
        %726 = vmatprep.subr.mxu0 0.0
        %727 = vmatpush1.xpose.msra.mxu0 0.0
        %728 = vmatprep.subr.mxu0 0.0
        %729 = vmatpush1.xpose.msra.mxu0 0.0
        %730 = vmatprep.subr.mxu0 0.0
        %731 = vmatpush1.xpose.msra.mxu0 0.0
        %732 = vmatprep.subr.mxu0 0.0
        %733 = vmatpush1.xpose.msra.mxu0 0.0
        %734 = vmatprep.subr.mxu0 0.0
        %735 = vmatpush1.xpose.msra.mxu0 0.0
        %736 = vmatprep.subr.mxu0 0.0
        %737 = vmatpush1.xpose.msra.mxu0 0.0
        %738 = vmatprep.subr.mxu0 0.0
        %739 = vmatpush1.xpose.msra.mxu0 0.0
        %740 = vmatprep.subr.mxu0 0.0
        %741 = vmatpush1.xpose.msra.mxu0 0.0
        %742 = vmatprep.subr.mxu0 0.0
        %743 = vmatpush1.xpose.msra.mxu0 0.0
        %744 = vmatprep.subr.mxu0 0.0
        %745 = vmatpush1.xpose.msra.mxu0 %v712
        %746 = vmatprep.subr.mxu0 0.0
        %747 = vmatpush2.xpose.msra.mxu0 0.0
        %748 = vmatprep.subr.mxu0 0.0
        %749 = vmatpush2.xpose.msra.mxu0 0.0
        %750 = vmatprep.subr.mxu0 0.0
        %751 = vmatpush2.xpose.msra.mxu0 0.0
        %752 = vmatprep.subr.mxu0 0.0
        %753 = vmatpush2.xpose.msra.mxu0 0.0
        %754 = vmatprep.subr.mxu0 0.0
        %755 = vmatpush2.xpose.msra.mxu0 0.0
        %756 = vmatprep.subr.mxu0 0.0
        %757 = vmatpush2.xpose.msra.mxu0 0.0
        %758 = vmatprep.subr.mxu0 0.0
        %759 = vmatpush2.xpose.msra.mxu0 0.0
        %760 = vmatprep.subr.mxu0 0.0
        %761 = vmatpush2.xpose.msra.mxu0 0.0
        %762 = vmatprep.subr.mxu0 0.0
        %763 = vmatpush2.xpose.msra.mxu0 0.0
        %764 = vmatprep.subr.mxu0 0.0
        %765 = vmatpush2.xpose.msra.mxu0 0.0
        %766 = vmatprep.subr.mxu0 0.0
        %767 = vmatpush2.xpose.msra.mxu0 0.0
        %768 = vmatprep.subr.mxu0 0.0
        %769 = vmatpush2.xpose.msra.mxu0 0.0
        %770 = vmatprep.subr.mxu0 0.0
        %771 = vmatpush2.xpose.msra.mxu0 0.0
        %772 = vmatprep.subr.mxu0 0.0
        %773 = vmatpush2.xpose.msra.mxu0 0.0
        %774 = vmatprep.subr.mxu0 0.0
        %775 = vmatpush2.xpose.msra.mxu0 0.0
        %776 = vmatprep.subr.mxu0 0.0
        %777 = vmatpush2.xpose.msra.mxu0 0.0
        %778 = vmatprep.mubr.f32.mxu0 0.0
        %779 = vmatmul.mubr.f32.gmra.mxu0 %v709
        %v780 = vpop.f32.mrf.mxu0
        %v781 = vadd.f32 0.0, %v780
        %v782 = vpop.f32.mrf.mxu0
        %783 = vdwg.mxu0
        %v785 = vsel %vm707, %v704, 0
        %v788 = vsel %vm707, %v706, 0
        %790 = vmatprep.subr.mxu0 0.0
        %791 = vmatpush1.xpose.msra.mxu0 0.0
        %792 = vmatprep.subr.mxu0 0.0
        %793 = vmatpush1.xpose.msra.mxu0 0.0
        %794 = vmatprep.subr.mxu0 0.0
        %795 = vmatpush1.xpose.msra.mxu0 0.0
        %796 = vmatprep.subr.mxu0 0.0
        %797 = vmatpush1.xpose.msra.mxu0 0.0
        %798 = vmatprep.subr.mxu0 0.0
        %799 = vmatpush1.xpose.msra.mxu0 0.0
        %800 = vmatprep.subr.mxu0 0.0
        %801 = vmatpush1.xpose.msra.mxu0 0.0
        %802 = vmatprep.subr.mxu0 0.0
        %803 = vmatpush1.xpose.msra.mxu0 0.0
        %804 = vmatprep.subr.mxu0 0.0
        %805 = vmatpush1.xpose.msra.mxu0 0.0
        %806 = vmatprep.subr.mxu0 0.0
        %807 = vmatpush1.xpose.msra.mxu0 0.0
        %808 = vmatprep.subr.mxu0 0.0
        %809 = vmatpush1.xpose.msra.mxu0 0.0
        %810 = vmatprep.subr.mxu0 0.0
        %811 = vmatpush1.xpose.msra.mxu0 0.0
        %812 = vmatprep.subr.mxu0 0.0
        %813 = vmatpush1.xpose.msra.mxu0 0.0
        %814 = vmatprep.subr.mxu0 0.0
        %815 = vmatpush1.xpose.msra.mxu0 0.0
        %816 = vmatprep.subr.mxu0 0.0
        %817 = vmatpush1.xpose.msra.mxu0 0.0
        %818 = vmatprep.subr.mxu0 0.0
        %819 = vmatpush1.xpose.msra.mxu0 0.0
        %820 = vmatprep.subr.mxu0 0.0
        %821 = vmatpush1.xpose.msra.mxu0 %v788
        %822 = vmatprep.subr.mxu0 0.0
        %823 = vmatpush2.xpose.msra.mxu0 0.0
        %824 = vmatprep.subr.mxu0 0.0
        %825 = vmatpush2.xpose.msra.mxu0 0.0
        %826 = vmatprep.subr.mxu0 0.0
        %827 = vmatpush2.xpose.msra.mxu0 0.0
        %828 = vmatprep.subr.mxu0 0.0
        %829 = vmatpush2.xpose.msra.mxu0 0.0
        %830 = vmatprep.subr.mxu0 0.0
        %831 = vmatpush2.xpose.msra.mxu0 0.0
        %832 = vmatprep.subr.mxu0 0.0
        %833 = vmatpush2.xpose.msra.mxu0 0.0
        %834 = vmatprep.subr.mxu0 0.0
        %835 = vmatpush2.xpose.msra.mxu0 0.0
        %836 = vmatprep.subr.mxu0 0.0
        %837 = vmatpush2.xpose.msra.mxu0 0.0
        %838 = vmatprep.subr.mxu0 0.0
        %839 = vmatpush2.xpose.msra.mxu0 0.0
        %840 = vmatprep.subr.mxu0 0.0
        %841 = vmatpush2.xpose.msra.mxu0 0.0
        %842 = vmatprep.subr.mxu0 0.0
        %843 = vmatpush2.xpose.msra.mxu0 0.0
        %844 = vmatprep.subr.mxu0 0.0
        %845 = vmatpush2.xpose.msra.mxu0 0.0
        %846 = vmatprep.subr.mxu0 0.0
        %847 = vmatpush2.xpose.msra.mxu0 0.0
        %848 = vmatprep.subr.mxu0 0.0
        %849 = vmatpush2.xpose.msra.mxu0 0.0
        %850 = vmatprep.subr.mxu0 0.0
        %851 = vmatpush2.xpose.msra.mxu0 0.0
        %852 = vmatprep.subr.mxu0 0.0
        %853 = vmatpush2.xpose.msra.mxu0 0.0
        %854 = vmatprep.mubr.f32.mxu0 0.0
        %855 = vmatmul.mubr.f32.gmra.mxu0 %v785
        %v856 = vpop.f32.mrf.mxu0
        %v857 = vadd.f32 0.0, %v856
        %v858 = vpop.f32.mrf.mxu0
        %859 = vdwg.mxu0
        %vm860 = vcmask 64512
        %v861 = vsel %vm860, %v781, -inf
        %862 = vmax.xlane.f32.xlu0 %v861
        %v863 = vpop.xlane.xlu0 %862
        %v864 = vsel %vm860, %v857, -inf
        %865 = vmax.xlane.f32.xlu0 %v864
        %v866 = vpop.xlane.xlu0 %865
        %v867 = vsub.f32 %v781, %v863
        %v868 = vsub.f32 %v857, %v866
        %v869 = vmul.f32 %v867, 1.442695
        %v870 = vpow.pop %v869
        %v871 = vmul.f32 %v868, 1.442695
        %v872 = vpow.pop %v871
        %v873 = vsel %vm860, %v870, 0.0
        %874 = vadd.xlane.f32.xlu0 %v873
        %v875 = vpop.xlane.xlu0 %874
        %v876 = vsel %vm860, %v872, 0.0
        %877 = vadd.xlane.f32.xlu0 %v876
        %v878 = vpop.xlane.xlu0 %877
        %879 = vrot.lane.b32.xlu0 %v705, 112
        %v880 = vpop.permute.xlu0 %879
        %v883 = vsel %vm860, %v870, 0
        %885 = vmatprep.subr.mxu0 0.0
        %886 = vmatpush1.msra.mxu0 0.0
        %887 = vmatprep.subr.mxu0 0.0
        %888 = vmatpush1.msra.mxu0 0.0
        %889 = vmatprep.subr.mxu0 0.0
        %890 = vmatpush1.msra.mxu0 0.0
        %891 = vmatprep.subr.mxu0 0.0
        %892 = vmatpush1.msra.mxu0 0.0
        %893 = vmatprep.subr.mxu0 0.0
        %894 = vmatpush1.msra.mxu0 0.0
        %895 = vmatprep.subr.mxu0 0.0
        %896 = vmatpush1.msra.mxu0 0.0
        %897 = vmatprep.subr.mxu0 0.0
        %898 = vmatpush1.msra.mxu0 0.0
        %899 = vmatprep.subr.mxu0 0.0
        %900 = vmatpush1.msra.mxu0 0.0
        %901 = vmatprep.subr.mxu0 0.0
        %902 = vmatpush1.msra.mxu0 0.0
        %903 = vmatprep.subr.mxu0 0.0
        %904 = vmatpush1.msra.mxu0 0.0
        %905 = vmatprep.subr.mxu0 0.0
        %906 = vmatpush1.msra.mxu0 0.0
        %907 = vmatprep.subr.mxu0 0.0
        %908 = vmatpush1.msra.mxu0 0.0
        %909 = vmatprep.subr.mxu0 0.0
        %910 = vmatpush1.msra.mxu0 0.0
        %911 = vmatprep.subr.mxu0 0.0
        %912 = vmatpush1.msra.mxu0 0.0
        %913 = vmatprep.subr.mxu0 0.0
        %914 = vmatpush1.msra.mxu0 0.0
        %915 = vmatprep.subr.mxu0 0.0
        %916 = vmatpush1.msra.mxu0 %v880
        %917 = vmatprep.subr.mxu0 0.0
        %918 = vmatpush2.msra.mxu0 0.0
        %919 = vmatprep.subr.mxu0 0.0
        %920 = vmatpush2.msra.mxu0 0.0
        %921 = vmatprep.subr.mxu0 0.0
        %922 = vmatpush2.msra.mxu0 0.0
        %923 = vmatprep.subr.mxu0 0.0
        %924 = vmatpush2.msra.mxu0 0.0
        %925 = vmatprep.subr.mxu0 0.0
        %926 = vmatpush2.msra.mxu0 0.0
        %927 = vmatprep.subr.mxu0 0.0
        %928 = vmatpush2.msra.mxu0 0.0
        %929 = vmatprep.subr.mxu0 0.0
        %930 = vmatpush2.msra.mxu0 0.0
        %931 = vmatprep.subr.mxu0 0.0
        %932 = vmatpush2.msra.mxu0 0.0
        %933 = vmatprep.subr.mxu0 0.0
        %934 = vmatpush2.msra.mxu0 0.0
        %935 = vmatprep.subr.mxu0 0.0
        %936 = vmatpush2.msra.mxu0 0.0
        %937 = vmatprep.subr.mxu0 0.0
        %938 = vmatpush2.msra.mxu0 0.0
        %939 = vmatprep.subr.mxu0 0.0
        %940 = vmatpush2.msra.mxu0 0.0
        %941 = vmatprep.subr.mxu0 0.0
        %942 = vmatpush2.msra.mxu0 0.0
        %943 = vmatprep.subr.mxu0 0.0
        %944 = vmatpush2.msra.mxu0 0.0
        %945 = vmatprep.subr.mxu0 0.0
        %946 = vmatpush2.msra.mxu0 0.0
        %947 = vmatprep.subr.mxu0 0.0
        %948 = vmatpush2.msra.mxu0 0.0
        %949 = vmatprep.mubr.f32.mxu0 0.0
        %950 = vmatmul.mubr.f32.gmra.mxu0 %v883
        %v951 = vpop.f32.mrf.mxu0
        %v952 = vadd.f32 0.0, %v951
        %v953 = vpop.f32.mrf.mxu0
        %954 = vdwg.mxu0
        %955 = vrot.lane.b32.xlu0 %v706, 112
        %v956 = vpop.permute.xlu0 %955
        %v959 = vsel %vm860, %v872, 0
        %961 = vmatprep.subr.mxu0 0.0
        %962 = vmatpush1.msra.mxu0 0.0
        %963 = vmatprep.subr.mxu0 0.0
        %964 = vmatpush1.msra.mxu0 0.0
        %965 = vmatprep.subr.mxu0 0.0
        %966 = vmatpush1.msra.mxu0 0.0
        %967 = vmatprep.subr.mxu0 0.0
        %968 = vmatpush1.msra.mxu0 0.0
        %969 = vmatprep.subr.mxu0 0.0
        %970 = vmatpush1.msra.mxu0 0.0
        %971 = vmatprep.subr.mxu0 0.0
        %972 = vmatpush1.msra.mxu0 0.0
        %973 = vmatprep.subr.mxu0 0.0
        %974 = vmatpush1.msra.mxu0 0.0
        %975 = vmatprep.subr.mxu0 0.0
        %976 = vmatpush1.msra.mxu0 0.0
        %977 = vmatprep.subr.mxu0 0.0
        %978 = vmatpush1.msra.mxu0 0.0
        %979 = vmatprep.subr.mxu0 0.0
        %980 = vmatpush1.msra.mxu0 0.0
        %981 = vmatprep.subr.mxu0 0.0
        %982 = vmatpush1.msra.mxu0 0.0
        %983 = vmatprep.subr.mxu0 0.0
        %984 = vmatpush1.msra.mxu0 0.0
        %985 = vmatprep.subr.mxu0 0.0
        %986 = vmatpush1.msra.mxu0 0.0
        %987 = vmatprep.subr.mxu0 0.0
        %988 = vmatpush1.msra.mxu0 0.0
        %989 = vmatprep.subr.mxu0 0.0
        %990 = vmatpush1.msra.mxu0 0.0
        %991 = vmatprep.subr.mxu0 0.0
        %992 = vmatpush1.msra.mxu0 %v956
        %993 = vmatprep.subr.mxu0 0.0
        %994 = vmatpush2.msra.mxu0 0.0
        %995 = vmatprep.subr.mxu0 0.0
        %996 = vmatpush2.msra.mxu0 0.0
        %997 = vmatprep.subr.mxu0 0.0
        %998 = vmatpush2.msra.mxu0 0.0
        %999 = vmatprep.subr.mxu0 0.0
        %1000 = vmatpush2.msra.mxu0 0.0
        %1001 = vmatprep.subr.mxu0 0.0
        %1002 = vmatpush2.msra.mxu0 0.0
        %1003 = vmatprep.subr.mxu0 0.0
        %1004 = vmatpush2.msra.mxu0 0.0
        %1005 = vmatprep.subr.mxu0 0.0
        %1006 = vmatpush2.msra.mxu0 0.0
        %1007 = vmatprep.subr.mxu0 0.0
        %1008 = vmatpush2.msra.mxu0 0.0
        %1009 = vmatprep.subr.mxu0 0.0
        %1010 = vmatpush2.msra.mxu0 0.0
        %1011 = vmatprep.subr.mxu0 0.0
        %1012 = vmatpush2.msra.mxu0 0.0
        %1013 = vmatprep.subr.mxu0 0.0
        %1014 = vmatpush2.msra.mxu0 0.0
        %1015 = vmatprep.subr.mxu0 0.0
        %1016 = vmatpush2.msra.mxu0 0.0
        %1017 = vmatprep.subr.mxu0 0.0
        %1018 = vmatpush2.msra.mxu0 0.0
        %1019 = vmatprep.subr.mxu0 0.0
        %1020 = vmatpush2.msra.mxu0 0.0
        %1021 = vmatprep.subr.mxu0 0.0
        %1022 = vmatpush2.msra.mxu0 0.0
        %1023 = vmatprep.subr.mxu0 0.0
        %1024 = vmatpush2.msra.mxu0 0.0
        %1025 = vmatprep.mubr.f32.mxu0 0.0
        %1026 = vmatmul.mubr.f32.gmra.mxu0 %v959
        %v1027 = vpop.f32.mrf.mxu0
        %v1028 = vadd.f32 0.0, %v1027
        %v1029 = vpop.f32.mrf.mxu0
        %1030 = vdwg.mxu0
        %v1031 = vrcp.pop %v875
        %v1032 = vrcp.pop %v878
        %v1033 = vmul.f32 %v952, %v1031
        %v1034 = vmul.f32 %v1028, %v1032
        %v1035 = vcombine.high %v1033, 0.0
        %v1037 = vunpack.c.l.s4 1983009808
        %v1038 = vunpack.c.0.s8 %v1037
        %v1039 = vlaneseq
        %v1040 = vshrl.u32 %v1039, 7
        %v1041 = vsub.s32 %v1038, %v1040
        %v1042 = vrot.slane %v1033, %v1041
        %v1044 = vunpack.c.l.s4 1983009808
        %v1045 = vunpack.c.0.s8 %v1044
        %v1046 = vlaneseq
        %v1047 = vshrl.u32 %v1046, 7
        %v1048 = vsub.s32 %v1045, %v1047
        %v1049 = vrot.slane %v1035, %v1048
        %v1050 = vcombine.high %v1034, 0.0
        %v1052 = vunpack.c.l.s4 1983009808
        %v1053 = vunpack.c.0.s8 %v1052
        %v1054 = vlaneseq
        %v1055 = vshrl.u32 %v1054, 7
        %v1056 = vsub.s32 %v1053, %v1055
        %v1057 = vrot.slane %v1034, %v1056
        %v1059 = vunpack.c.l.s4 1983009808
        %v1060 = vunpack.c.0.s8 %v1059
        %v1061 = vlaneseq
        %v1062 = vshrl.u32 %v1061, 7
        %v1063 = vsub.s32 %v1060, %v1062
        %v1064 = vrot.slane %v1050, %v1063
        %v1065 = vcombine.low %v1042, %v1057
        %v1066 = vcombine.high %v1042, %v1057
        %v1068 = vunpack.c.l.s4 1934713408
        %v1069 = vunpack.c.0.s8 %v1068
        %v1070 = vlaneseq
        %v1071 = vshrl.u32 %v1070, 7
        %v1072 = vsub.s32 %v1069, %v1071
        %v1073 = vrot.slane %v1065, %v1072
        %v1075 = vunpack.c.l.s4 1934713408
        %v1076 = vunpack.c.0.s8 %v1075
        %v1077 = vlaneseq
        %v1078 = vshrl.u32 %v1077, 7
        %v1079 = vsub.s32 %v1076, %v1078
        %v1080 = vrot.slane %v1066, %v1079
        %v1081 = vcombine.low %v1049, %v1064
        %v1082 = vcombine.high %v1049, %v1064
        %v1084 = vunpack.c.l.s4 1934713408
        %v1085 = vunpack.c.0.s8 %v1084
        %v1086 = vlaneseq
        %v1087 = vshrl.u32 %v1086, 7
        %v1088 = vsub.s32 %v1085, %v1087
        %v1089 = vrot.slane %v1081, %v1088
        %v1091 = vunpack.c.l.s4 1934713408
        %v1092 = vunpack.c.0.s8 %v1091
        %v1093 = vlaneseq
        %v1094 = vshrl.u32 %v1093, 7
        %v1095 = vsub.s32 %v1092, %v1094
        %v1096 = vrot.slane %v1082, %v1095
        %v1097 = vcombine.high %v1073, 0.0
        %v1098 = vcombine.high %v1080, 0.0
        %v1099 = vcombine.high %v1089, 0.0
        %v1100 = vcombine.high %v1096, 0.0
        %v1101 = vcombine.low %v1073, %v1080
        %v1103 = vunpack.c.l.s4 1983009808
        %v1104 = vunpack.c.0.s8 %v1103
        %v1105 = vlaneseq
        %v1106 = vshrl.u32 %v1105, 7
        %v1107 = vsub.s32 %v1104, %v1106
        %v1108 = vrot.slane %v1101, %v1107
        %v1109 = vcombine.low %v1097, %v1098
        %v1111 = vunpack.c.l.s4 1983009808
        %v1112 = vunpack.c.0.s8 %v1111
        %v1113 = vlaneseq
        %v1114 = vshrl.u32 %v1113, 7
        %v1115 = vsub.s32 %v1112, %v1114
        %v1116 = vrot.slane %v1109, %v1115
        %v1117 = vcombine.low %v1089, %v1096
        %v1119 = vunpack.c.l.s4 1983009808
        %v1120 = vunpack.c.0.s8 %v1119
        %v1121 = vlaneseq
        %v1122 = vshrl.u32 %v1121, 7
        %v1123 = vsub.s32 %v1120, %v1122
        %v1124 = vrot.slane %v1117, %v1123
        %v1125 = vcombine.low %v1099, %v1100
        %v1127 = vunpack.c.l.s4 1983009808
        %v1128 = vunpack.c.0.s8 %v1127
        %v1129 = vlaneseq
        %v1130 = vshrl.u32 %v1129, 7
        %v1131 = vsub.s32 %v1128, %v1130
        %v1132 = vrot.slane %v1125, %v1131
        %v1133 = vcombine.low %v1108, %v1116
        %v1135 = vunpack.c.l.s4 1934713408
        %v1136 = vunpack.c.0.s8 %v1135
        %v1137 = vlaneseq
        %v1138 = vshrl.u32 %v1137, 7
        %v1139 = vsub.s32 %v1136, %v1138
        %v1140 = vrot.slane %v1133, %v1139
        %v1141 = vcombine.low %v1124, %v1132
        %v1143 = vunpack.c.l.s4 1934713408
        %v1144 = vunpack.c.0.s8 %v1143
        %v1145 = vlaneseq
        %v1146 = vshrl.u32 %v1145, 7
        %v1147 = vsub.s32 %v1144, %v1146
        %v1148 = vrot.slane %v1141, %v1147
        %v1149 = vcombine.low %v1140, %v1148
        %v1150 = vcombine.high %v1140, %v1148
        %1152 = vrot.lane.b32.xlu0 %v1150, 16
        %v1153 = vpop.permute.xlu0 %1152
        %v1155 = vsel %vm707, %v1149, %v1153
        %v1156 = vld [vmem:[#allocation9] sm:$0xff]
        %v1157 = vld [vmem:[#allocation9 + $0x8] sm:$0xff]
        %v1158 = vld [vmem:[#allocation9 + $0x10] sm:$0xff]
        %v1159 = vld [vmem:[#allocation9 + $0x18] sm:$0xff]
        %v1160 = vld [vmem:[%s4] sm:$0x1]
        %v1162 = vlaneseq
        %v1163 = vshrl.u32 %v1162, 7
        %v1164 = vsub.s32 0, %v1163
        %v1165 = vrot.slane %v1160, %v1164
        %v1168 = vsel %vm510, %v1155, 0
        %1170 = vmatprep.subr.mxu0 0.0
        %1171 = vmatpush1.msra.mxu0 0.0
        %1172 = vmatprep.subr.mxu0 0.0
        %1173 = vmatpush1.msra.mxu0 0.0
        %1174 = vmatprep.subr.mxu0 0.0
        %1175 = vmatpush1.msra.mxu0 0.0
        %1176 = vmatprep.subr.mxu0 0.0
        %1177 = vmatpush1.msra.mxu0 0.0
        %1178 = vmatprep.subr.mxu0 0.0
        %1179 = vmatpush1.msra.mxu0 0.0
        %1180 = vmatprep.subr.mxu0 0.0
        %1181 = vmatpush1.msra.mxu0 0.0
        %1182 = vmatprep.subr.mxu0 0.0
        %1183 = vmatpush1.msra.mxu0 0.0
        %1184 = vmatprep.subr.mxu0 0.0
        %1185 = vmatpush1.msra.mxu0 0.0
        %1186 = vmatprep.subr.mxu0 0.0
        %1187 = vmatpush1.msra.mxu0 0.0
        %1188 = vmatprep.subr.mxu0 0.0
        %1189 = vmatpush1.msra.mxu0 0.0
        %1190 = vmatprep.subr.mxu0 0.0
        %1191 = vmatpush1.msra.mxu0 0.0
        %1192 = vmatprep.subr.mxu0 0.0
        %1193 = vmatpush1.msra.mxu0 0.0
        %1194 = vmatprep.subr.mxu0 0.0
        %1195 = vmatpush1.msra.mxu0 %v1159
        %1196 = vmatprep.subr.mxu0 0.0
        %1197 = vmatpush1.msra.mxu0 %v1158
        %1198 = vmatprep.subr.mxu0 0.0
        %1199 = vmatpush1.msra.mxu0 %v1157
        %1200 = vmatprep.subr.mxu0 0.0
        %1201 = vmatpush1.msra.mxu0 %v1156
        %1202 = vmatprep.subr.mxu0 0.0
        %1203 = vmatpush2.msra.mxu0 0.0
        %1204 = vmatprep.subr.mxu0 0.0
        %1205 = vmatpush2.msra.mxu0 0.0
        %1206 = vmatprep.subr.mxu0 0.0
        %1207 = vmatpush2.msra.mxu0 0.0
        %1208 = vmatprep.subr.mxu0 0.0
        %1209 = vmatpush2.msra.mxu0 0.0
        %1210 = vmatprep.subr.mxu0 0.0
        %1211 = vmatpush2.msra.mxu0 0.0
        %1212 = vmatprep.subr.mxu0 0.0
        %1213 = vmatpush2.msra.mxu0 0.0
        %1214 = vmatprep.subr.mxu0 0.0
        %1215 = vmatpush2.msra.mxu0 0.0
        %1216 = vmatprep.subr.mxu0 0.0
        %1217 = vmatpush2.msra.mxu0 0.0
        %1218 = vmatprep.subr.mxu0 0.0
        %1219 = vmatpush2.msra.mxu0 0.0
        %1220 = vmatprep.subr.mxu0 0.0
        %1221 = vmatpush2.msra.mxu0 0.0
        %1222 = vmatprep.subr.mxu0 0.0
        %1223 = vmatpush2.msra.mxu0 0.0
        %1224 = vmatprep.subr.mxu0 0.0
        %1225 = vmatpush2.msra.mxu0 0.0
        %1226 = vmatprep.subr.mxu0 0.0
        %1227 = vmatpush2.msra.mxu0 0.0
        %1228 = vmatprep.subr.mxu0 0.0
        %1229 = vmatpush2.msra.mxu0 0.0
        %1230 = vmatprep.subr.mxu0 0.0
        %1231 = vmatpush2.msra.mxu0 0.0
        %1232 = vmatprep.subr.mxu0 0.0
        %1233 = vmatpush2.msra.mxu0 0.0
        %1234 = vmatprep.mubr.f32.mxu0 0.0
        %1235 = vmatmul.mubr.f32.gmra.mxu0 %v1168
        %v1236 = vpop.f32.mrf.mxu0
        %v1237 = vadd.f32 %v1165, %v1236
        %v1238 = vpop.f32.mrf.mxu0
        %1239 = vdwg.mxu0
        %1240 = vst.msk [vmem:[%s297] sm:$0xff] %vm510, %v1237
        %s1241 = sand.u32 %s156, 1
        %s1242 = scalar_lea.sflag [#allocation5], %s1241
        %s1243 = sand.u32 %s156, 1
        %s1244 = smul.addr %s1243, 8
        %s1245 = scalar_lea.vmem [#allocation11], %s1244
        // Predicated region
        $region61: #{tpu_custom_call.1} parent=39 // pred_check
          %p1246 = pneg %p166
        $region62: #{tpu_custom_call.1} parent=39 // pred_check_branch
          %1248 = sbr.rel (%p1246) target = $region64
        $region63: #{tpu_custom_call.1} parent=39 // pred_region
          %s1250 = ssub.s32 128, 128
          %1251 = vsyncadd %s1242, %s1250
          %s1252 = sadd.s32 %s29, %s28
          %s1253 = smul.addr %s1252, 128
          %s1254 = scalar_lea.hbm %s5, %s1253
          %s1256 = sshll.u32 %s1245, 4
          %s1257 = int_to_ptr.vmem [resolvable:$true] %s1256
          %1259 = dma.vmem_to_hbm [thread:$0]  %s1257, 128, %s1254, %s1242
        $region64: #{tpu_custom_call.1} parent=39 // pred_fallthru
          _
      $region40: #{tpu_custom_call.1} parent=5 // pred_fallthru
        _
      %p1260 = scmp.le.s32.totalorder 2, %s19
      // Predicated region
      $region65: #{tpu_custom_call.1} parent=5 // pred_check
        %p1261 = pneg %p1260
      $region66: #{tpu_custom_call.1} parent=5 // pred_check_branch
        %1263 = sbr.rel (%p1261) target = $region68
      $region67: #{tpu_custom_call.1} parent=5 // pred_region
        %s1264 = ssub.s32 %s19, 2
        // Predicated region
        $region69: #{tpu_custom_call.1} parent=67 // pred_check
          %p1265 = pneg %p172
        $region70: #{tpu_custom_call.1} parent=67 // pred_check_branch
          %1267 = sbr.rel (%p1265) target = $region72
        $region71: #{tpu_custom_call.1} parent=67 // pred_region
          %s1268 = sand.u32 %s157, 1
          %s1269 = scalar_lea.sflag [#allocation5], %s1268
          %s1270 = sand.u32 %s157, 1
          %s1271 = smul.addr %s1270, 8
          %s1272 = scalar_lea.vmem [#allocation11], %s1271
          %1273 = dma.done %s1269, 128
        $region72: #{tpu_custom_call.1} parent=67 // pred_fallthru
          _
      $region68: #{tpu_custom_call.1} parent=5 // pred_fallthru
        _
    $region6: #{tpu_custom_call.1} parent=1 // loop_footer
      %s23 = sadd.s32 1, %s19
    $region7: #{tpu_custom_call.1} parent=1 // loop_footer_branch
      %18 = sbr.rel target = $region3
    $region8: #{tpu_custom_call.1} parent=1 // loop_exit
      _
    %1274 = vsyncpa [#allocation4], 1
    %s1275 = scalar_lea.sflag [#allocation4], 1
    %1276 = vsyncpa %s1275, 1
    %1277 = vsyncpa [#allocation7], 1
    %1278 = vsyncpa [#allocation10], 1
    %1279 = vsyncpa [#allocation5], 1
    %s1280 = scalar_lea.sflag [#allocation5], 1
    %1281 = vsyncpa %s1280, 1

</llo_original>
